<compile_context>
chip_gen: v7x
topology: tpu7x:2x2x1
jax: 0.10.0
libtpu: 0.0.40
codegen_flags: <defaults>
</compile_context>

<pallas_src>
import functools

import jax
import jax.numpy as jnp
import numpy as np
from jax.experimental import pallas as pl
from jax.experimental.pallas import tpu as pltpu


# ----------------------------------------------------------------------------
# Kernel
# ----------------------------------------------------------------------------
def _head_kernel(seq_ref, pooled_ref, masks_ref, inv_len_ref,
                 w_cls_ref, b_cls_ref,
                 w_e1_ref, b_e1_ref,
                 w_e2_ref, b_e2_ref,
                 w_lab_ref, b_lab_ref,
                 logits_ref, concat_ref):
    cdt = w_cls_ref.dtype              # MXU-native compute dtype (bf16 in demo)

    seq = seq_ref[...]                 # [TB, S, H]  storage dtype (bf16/f32)
    masks = masks_ref[...]             # [TB, 2, S]  row 0 = e1_mask, row 1 = e2_mask

    # --- entity_average: both masked sums in ONE batched MXU contraction,
    #     f32 accumulation.  No [B,S,H] f32 temporaries, no VPU pass.
    sums = jnp.einsum("bks,bsh->bkh", masks, seq,
                      preferred_element_type=jnp.float32)          # [TB, 2, H]
    inv_len = inv_len_ref[...]                                      # [TB, 2] f32
    e1_h = sums[:, 0, :] * inv_len[:, 0:1]                          # [TB, H] f32
    e2_h = sums[:, 1, :] * inv_len[:, 1:2]                          # [TB, H] f32

    # --- FC layers (dropout == identity at inference): tanh(x @ W + b) ---
    cls_out = jnp.tanh(
        jnp.dot(pooled_ref[...].astype(cdt), w_cls_ref[...],
                preferred_element_type=jnp.float32) + b_cls_ref[...])
    e1_out = jnp.tanh(
        jnp.dot(e1_h.astype(cdt), w_e1_ref[...],
                preferred_element_type=jnp.float32) + b_e1_ref[...])
    e2_out = jnp.tanh(
        jnp.dot(e2_h.astype(cdt), w_e2_ref[...],
                preferred_element_type=jnp.float32) + b_e2_ref[...])

    # --- concat + label classifier (no activation, lane-dense padded out) ---
    concat = jnp.concatenate([cls_out, e1_out, e2_out], axis=-1)    # [TB, 3H] f32
    logits = (jnp.dot(concat.astype(w_lab_ref.dtype), w_lab_ref[...],
                      preferred_element_type=jnp.float32)
              + b_lab_ref[...])

    concat_ref[...] = concat.astype(concat_ref.dtype)
    logits_ref[...] = logits.astype(logits_ref.dtype)


# ----------------------------------------------------------------------------
# Tile / VMEM budgeting helpers
# ----------------------------------------------------------------------------
def _vmem_capacity_bytes():
    """Per-core VMEM capacity; conservative (v7x, 64 MiB) fallback."""
    try:
        info = pltpu.get_tpu_info()
        cap = getattr(info, "vmem_capacity_bytes", None)
        if cap:
            return int(cap)
    except Exception:
        pass
    return 64 << 20


def _round_down8(x):
    return max(8, (x // 8) * 8)


def _pick_batch_tile(B, per_row_bytes, fixed_bytes, vmem_cap):
    """Largest multiple-of-8 batch tile that
       (a) fits ~75% of VMEM together with the resident (2-buffered) weights,
       (b) leaves >= 4 grid steps when B allows, so both v7x TensorCores get
           >= 2 pipelined iterations and the seq DMA always overlaps compute."""
    if B <= 8:
        return B                                     # full dim is always legal
    budget = int(0.75 * vmem_cap) - fixed_bytes
    tb_vmem = _round_down8(max(8, budget // max(1, per_row_bytes)))
    tb_steps = _round_down8(max(8, B // 4))          # grid >= 4 once B >= 32
    tb_full = _round_down8(B)
    return max(8, min(tb_vmem, tb_steps, tb_full))


# ----------------------------------------------------------------------------
# Wrapper
# ----------------------------------------------------------------------------
@functools.partial(jax.jit, static_argnames=("batch_tile",))
def rebert_adapter_head(sequence_output, pooled_output, e1_mask, e2_mask, params,
                        *, batch_tile=None):
    B, S, H = sequence_output.shape
    num_labels = params["w_lab"].shape[1]
    nl_pad = max(128, ((num_labels + 127) // 128) * 128)
    seq_dtype = sequence_output.dtype
    sz = jnp.dtype(seq_dtype).itemsize
    wsz = jnp.dtype(params["w_cls"].dtype).itemsize
    lsz = jnp.dtype(params["w_lab"].dtype).itemsize

    # Stack masks so the kernel does a single contraction; precompute 1/length
    # (tiny [B,2] f32) so the kernel has no compare / XLU reduce / reciprocal.
    m = jnp.stack([e1_mask, e2_mask], axis=1)                       # [B, 2, S]
    lengths = jnp.sum((m != 0).astype(jnp.float32), axis=-1)        # [B, 2]
    inv_len = 1.0 / lengths        # zero-length mask -> inf (matches PyTorch)
    masks = m.astype(seq_dtype)    # exact for 0/1 masks

    # Pad the classifier to a lane-dense (multiple of 128) output width.
    w_lab = jnp.pad(params["w_lab"], ((0, 0), (0, nl_pad - num_labels)))
    b_lab = jnp.pad(params["b_lab"], ((0, 0), (0, nl_pad - num_labels)))

    # --- VMEM accounting (default: 2 buffers per operand) --------------------
    weight_bytes = ((3 * H * H + 3 * H) * wsz
                    + (3 * H * nl_pad + nl_pad) * lsz)
    fixed_bytes = 2 * weight_bytes
    per_row_bytes = 2 * (S * H * sz          # sequence tile (dominant)
                         + H * sz            # pooled_output
                         + 2 * S * sz        # stacked masks
                         + 2 * 4             # inv_len (f32)
                         + nl_pad * 4        # logits out (f32)
                         + 3 * H * 4)        # concat out (f32)

    vmem_cap = _vmem_capacity_bytes()
    TB = batch_tile if batch_tile is not None else _pick_batch_tile(
        B, per_row_bytes, fixed_bytes, vmem_cap)
    grid = (pl.cdiv(B, TB),)

    needed = fixed_bytes + per_row_bytes * TB
    vmem_limit = int(min(max(needed + (4 << 20), 32 << 20), 0.95 * vmem_cap))

    const2 = lambda i: (0, 0)
    in_specs = [
        pl.BlockSpec((TB, S, H), lambda i: (i, 0, 0)),      # sequence_output
        pl.BlockSpec((TB, H), lambda i: (i, 0)),            # pooled_output
        pl.BlockSpec((TB, 2, S), lambda i: (i, 0, 0)),      # stacked masks
        pl.BlockSpec((TB, 2), lambda i: (i, 0)),            # inv_len (f32)
        pl.BlockSpec((H, H), const2),                       # w_cls (VMEM-resident)
        pl.BlockSpec((1, H), const2),                       # b_cls
        pl.BlockSpec((H, H), const2),                       # w_e1
        pl.BlockSpec((1, H), const2),                       # b_e1
        pl.BlockSpec((H, H), const2),                       # w_e2
        pl.BlockSpec((1, H), const2),                       # b_e2
        pl.BlockSpec((3 * H, nl_pad), const2),              # w_lab (padded)
        pl.BlockSpec((1, nl_pad), const2),                  # b_lab (padded)
    ]
    out_shapes = (
        jax.ShapeDtypeStruct((B, nl_pad), jnp.float32),     # logits (padded)
        jax.ShapeDtypeStruct((B, 3 * H), jnp.float32),      # cls_repr (concat)
    )
    out_specs = [
        pl.BlockSpec((TB, nl_pad), lambda i: (i, 0)),
        pl.BlockSpec((TB, 3 * H), lambda i: (i, 0)),
    ]

    logits_pad, cls_repr = pl.pallas_call(
        _head_kernel,
        out_shape=out_shapes,
        grid=grid,
        in_specs=in_specs,
        out_specs=out_specs,
        compiler_params=pltpu.CompilerParams(
            dimension_semantics=("parallel",),
            vmem_limit_bytes=vmem_limit),
    )(sequence_output, pooled_output, masks, inv_len,
      params["w_cls"], params["b_cls"],
      params["w_e1"], params["b_e1"],
      params["w_e2"], params["b_e2"],
      w_lab, b_lab)

    logits = logits_pad[:, :num_labels]
    # pooler_repr (== cls_fc(pooled_output)) is exactly the first H columns of
    # the concat representation; slice instead of a third kernel output.
    return {"logits": logits, "pooler_repr": cls_repr[:, :H], "cls_repr": cls_repr}


# ----------------------------------------------------------------------------
# Pure-JAX reference (f32 math on the same inputs)
# ----------------------------------------------------------------------------
def _reference(sequence_output, pooled_output, e1_mask, e2_mask, p):
    f32 = lambda a: a.astype(jnp.float32)
    seq = f32(sequence_output)
    pooled = f32(pooled_output)

    def ent_avg(mask):
        mask = f32(mask)
        length = jnp.sum((mask != 0).astype(jnp.float32), axis=1, keepdims=True)
        return jnp.einsum("bs,bsh->bh", mask, seq) / length

    e1_h = ent_avg(e1_mask)
    e2_h = ent_avg(e2_mask)
    cls_out = jnp.tanh(pooled @ f32(p["w_cls"]) + f32(p["b_cls"])[0])
    e1_out = jnp.tanh(e1_h @ f32(p["w_e1"]) + f32(p["b_e1"])[0])
    e2_out = jnp.tanh(e2_h @ f32(p["w_e2"]) + f32(p["b_e2"])[0])
    concat = jnp.concatenate([cls_out, e1_out, e2_out], axis=-1)
    logits = concat @ f32(p["w_lab"]) + f32(p["b_lab"])[0]
    return logits, cls_out, concat


if __name__ == "__main__":
    # Small shapes; B=16 with TB=8 (auto-picked) exercises a 2-step pipelined grid.
    B, S, H, NUM_LABELS = 16, 16, 32, 5

    key = jax.random.PRNGKey(0)
    ks = jax.random.split(key, 8)

    # Backbone outputs are consumed in bf16 (their native dtype) — halves the
    # dominant HBM traffic and keeps the matmuls MXU-native on v5e/v6e.
    sequence_output = jax.random.normal(ks[0], (B, S, H), jnp.float32).astype(jnp.bfloat16)
    pooled_output = jax.random.normal(ks[1], (B, H), jnp.float32).astype(jnp.bfloat16)

    # Deterministic entity masks: e1 covers tokens 3..5, e2 covers 8..10.
    e1_mask = np.zeros((B, S), dtype=np.float32)
    e2_mask = np.zeros((B, S), dtype=np.float32)
    e1_mask[:, 3:6] = 1.0
    e2_mask[:, 8:11] = 1.0
    e1_mask = jnp.asarray(e1_mask)
    e2_mask = jnp.asarray(e2_mask)

    def lin_init(k, fan_in, fan_out):
        bound = 1.0 / np.sqrt(fan_in)
        kw, kb = jax.random.split(k)
        w = jax.random.uniform(kw, (fan_in, fan_out), jnp.float32, -bound, bound)
        b = jax.random.uniform(kb, (1, fan_out), jnp.float32, -bound, bound)
        return w.astype(jnp.bfloat16), b.astype(jnp.bfloat16)

    w_cls, b_cls = lin_init(ks[2], H, H)
    w_e1, b_e1 = lin_init(ks[3], H, H)
    w_e2, b_e2 = lin_init(ks[4], H, H)
    w_lab, b_lab = lin_init(ks[5], 3 * H, NUM_LABELS)

    params = dict(w_cls=w_cls, b_cls=b_cls, w_e1=w_e1, b_e1=b_e1,
                  w_e2=w_e2, b_e2=b_e2, w_lab=w_lab, b_lab=b_lab)

    out = rebert_adapter_head(sequence_output, pooled_output, e1_mask, e2_mask, params)
    jax.block_until_ready(out)

    ref_logits, ref_pooler, ref_concat = _reference(
        sequence_output, pooled_output, e1_mask, e2_mask, params)
    # bf16 operands -> bf16-level tolerances vs the f32 reference.
    np.testing.assert_allclose(np.asarray(out["logits"]), np.asarray(ref_logits),
                               rtol=5e-2, atol=5e-2)
    np.testing.assert_allclose(np.asarray(out["pooler_repr"]), np.asarray(ref_pooler),
                               rtol=5e-2, atol=5e-2)
    np.testing.assert_allclose(np.asarray(out["cls_repr"]), np.asarray(ref_concat),
                               rtol=5e-2, atol=5e-2)

    print("KERNEL_OK")
</pallas_src>

<mosaic_0001>
module attributes {stable_mosaic.version = 11 : i64} {
  func.func @_head_kernel(%arg0: i32, %arg1: memref<8x16x32xbf16, #tpu.memory_space<vmem>>, %arg2: memref<8x32xbf16, #tpu.memory_space<vmem>>, %arg3: memref<8x2x16xbf16, #tpu.memory_space<vmem>>, %arg4: memref<8x2xf32, #tpu.memory_space<vmem>>, %arg5: memref<32x32xbf16, #tpu.memory_space<vmem>>, %arg6: memref<1x32xbf16, #tpu.memory_space<vmem>>, %arg7: memref<32x32xbf16, #tpu.memory_space<vmem>>, %arg8: memref<1x32xbf16, #tpu.memory_space<vmem>>, %arg9: memref<32x32xbf16, #tpu.memory_space<vmem>>, %arg10: memref<1x32xbf16, #tpu.memory_space<vmem>>, %arg11: memref<96x128xbf16, #tpu.memory_space<vmem>>, %arg12: memref<1x128xbf16, #tpu.memory_space<vmem>>, %arg13: memref<8x128xf32, #tpu.memory_space<vmem>>, %arg14: memref<8x96xf32, #tpu.memory_space<vmem>>) attributes {dimension_semantics = [#tpu.dimension_semantics<parallel>], iteration_bounds = array<i64: 2>, scalar_prefetch = 0 : i64, scratch_operands = 0 : i64, tpu.core_type = #tpu.core_type<tc>, window_params = [{transform_indices = @transform_0, window_bounds = array<i64: 8, 16, 32>}, {transform_indices = @transform_1, window_bounds = array<i64: 8, 32>}, {transform_indices = @transform_2, window_bounds = array<i64: 8, 2, 16>}, {transform_indices = @transform_3, window_bounds = array<i64: 8, 2>}, {pipeline_mode = #tpu.pipeline_mode<synchronous>, transform_indices = @transform_4, window_bounds = array<i64: 32, 32>}, {pipeline_mode = #tpu.pipeline_mode<synchronous>, transform_indices = @transform_5, window_bounds = array<i64: 1, 32>}, {pipeline_mode = #tpu.pipeline_mode<synchronous>, transform_indices = @transform_6, window_bounds = array<i64: 32, 32>}, {pipeline_mode = #tpu.pipeline_mode<synchronous>, transform_indices = @transform_7, window_bounds = array<i64: 1, 32>}, {pipeline_mode = #tpu.pipeline_mode<synchronous>, transform_indices = @transform_8, window_bounds = array<i64: 32, 32>}, {pipeline_mode = #tpu.pipeline_mode<synchronous>, transform_indices = @transform_9, window_bounds = array<i64: 1, 32>}, {pipeline_mode = #tpu.pipeline_mode<synchronous>, transform_indices = @transform_10, window_bounds = array<i64: 96, 128>}, {pipeline_mode = #tpu.pipeline_mode<synchronous>, transform_indices = @transform_11, window_bounds = array<i64: 1, 128>}, {transform_indices = @transform_12, window_bounds = array<i64: 8, 128>}, {transform_indices = @transform_13, window_bounds = array<i64: 8, 96>}]} {
    %c0 = arith.constant 0 : index
    %c0_0 = arith.constant 0 : index
    %c0_1 = arith.constant 0 : index
    %0 = vector.load %arg1[%c0, %c0_0, %c0_1] : memref<8x16x32xbf16, #tpu.memory_space<vmem>>, vector<8x16x32xbf16>
    %c0_2 = arith.constant 0 : index
    %c0_3 = arith.constant 0 : index
    %c0_4 = arith.constant 0 : index
    %1 = vector.load %arg3[%c0_2, %c0_3, %c0_4] : memref<8x2x16xbf16, #tpu.memory_space<vmem>>, vector<8x2x16xbf16>
    "tpu.trace_start"() <{level = 10 : i32, message = "bks,bsh->bkh"}> : () -> ()
    %cst = arith.constant dense<0.000000e+00> : vector<8x2x32xf32>
    %2 = tpu.matmul %1, %0, %cst {dimension_numbers = #tpu.dot_dimension_numbers<[2], [1], [1], [2], [0, 0, 0, 1, 1, 2], [0], [0]>} : vector<8x2x16xbf16>, vector<8x16x32xbf16>, vector<8x2x32xf32> -> vector<8x2x32xf32>
    "tpu.trace_stop"() : () -> ()
    %c0_5 = arith.constant 0 : index
    %c0_6 = arith.constant 0 : index
    %3 = vector.load %arg4[%c0_5, %c0_6] : memref<8x2xf32, #tpu.memory_space<vmem>>, vector<8x2xf32>
    %4 = vector.extract_strided_slice %2 {offsets = [0, 0, 0], sizes = [8, 1, 32], strides = [1, 1, 1]} : vector<8x2x32xf32> to vector<8x1x32xf32>
    %5 = vector.shape_cast %4 : vector<8x1x32xf32> to vector<8x32xf32>
    %6 = vector.extract_strided_slice %3 {offsets = [0, 0], sizes = [8, 1], strides = [1, 1]} : vector<8x2xf32> to vector<8x1xf32>
    %7 = vector.broadcast %6 : vector<8x1xf32> to vector<8x32xf32>
    %8 = arith.mulf %5, %7 : vector<8x32xf32>
    %9 = vector.extract_strided_slice %2 {offsets = [0, 1, 0], sizes = [8, 1, 32], strides = [1, 1, 1]} : vector<8x2x32xf32> to vector<8x1x32xf32>
    %10 = vector.shape_cast %9 : vector<8x1x32xf32> to vector<8x32xf32>
    %11 = vector.extract_strided_slice %3 {offsets = [0, 1], sizes = [8, 1], strides = [1, 1]} : vector<8x2xf32> to vector<8x1xf32>
    %12 = vector.broadcast %11 : vector<8x1xf32> to vector<8x32xf32>
    %13 = arith.mulf %10, %12 : vector<8x32xf32>
    %c0_7 = arith.constant 0 : index
    %c0_8 = arith.constant 0 : index
    %14 = vector.load %arg2[%c0_7, %c0_8] : memref<8x32xbf16, #tpu.memory_space<vmem>>, vector<8x32xbf16>
    %c0_9 = arith.constant 0 : index
    %c0_10 = arith.constant 0 : index
    %15 = vector.load %arg5[%c0_9, %c0_10] : memref<32x32xbf16, #tpu.memory_space<vmem>>, vector<32x32xbf16>
    %cst_11 = arith.constant dense<0.000000e+00> : vector<8x32xf32>
    %16 = tpu.matmul %14, %15, %cst_11 {dimension_numbers = #tpu.dot_dimension_numbers<[1], [0], [0], [1], [0, 0, 1, 1], [], []>} : vector<8x32xbf16>, vector<32x32xbf16>, vector<8x32xf32> -> vector<8x32xf32>
    %c0_12 = arith.constant 0 : index
    %c0_13 = arith.constant 0 : index
    %17 = vector.load %arg6[%c0_12, %c0_13] : memref<1x32xbf16, #tpu.memory_space<vmem>>, vector<1x32xbf16>
    %18 = arith.extf %17 : vector<1x32xbf16> to vector<1x32xf32>
    %19 = vector.broadcast %18 : vector<1x32xf32> to vector<8x32xf32>
    %20 = arith.addf %16, %19 : vector<8x32xf32>
    %21 = math.tanh %20 : vector<8x32xf32>
    %22 = arith.truncf %8 : vector<8x32xf32> to vector<8x32xbf16>
    %c0_14 = arith.constant 0 : index
    %c0_15 = arith.constant 0 : index
    %23 = vector.load %arg7[%c0_14, %c0_15] : memref<32x32xbf16, #tpu.memory_space<vmem>>, vector<32x32xbf16>
    %cst_16 = arith.constant dense<0.000000e+00> : vector<8x32xf32>
    %24 = tpu.matmul %22, %23, %cst_16 {dimension_numbers = #tpu.dot_dimension_numbers<[1], [0], [0], [1], [0, 0, 1, 1], [], []>} : vector<8x32xbf16>, vector<32x32xbf16>, vector<8x32xf32> -> vector<8x32xf32>
    %c0_17 = arith.constant 0 : index
    %c0_18 = arith.constant 0 : index
    %25 = vector.load %arg8[%c0_17, %c0_18] : memref<1x32xbf16, #tpu.memory_space<vmem>>, vector<1x32xbf16>
    %26 = arith.extf %25 : vector<1x32xbf16> to vector<1x32xf32>
    %27 = vector.broadcast %26 : vector<1x32xf32> to vector<8x32xf32>
    %28 = arith.addf %24, %27 : vector<8x32xf32>
    %29 = math.tanh %28 : vector<8x32xf32>
    %30 = arith.truncf %13 : vector<8x32xf32> to vector<8x32xbf16>
    %c0_19 = arith.constant 0 : index
    %c0_20 = arith.constant 0 : index
    %31 = vector.load %arg9[%c0_19, %c0_20] : memref<32x32xbf16, #tpu.memory_space<vmem>>, vector<32x32xbf16>
    %cst_21 = arith.constant dense<0.000000e+00> : vector<8x32xf32>
    %32 = tpu.matmul %30, %31, %cst_21 {dimension_numbers = #tpu.dot_dimension_numbers<[1], [0], [0], [1], [0, 0, 1, 1], [], []>} : vector<8x32xbf16>, vector<32x32xbf16>, vector<8x32xf32> -> vector<8x32xf32>
    %c0_22 = arith.constant 0 : index
    %c0_23 = arith.constant 0 : index
    %33 = vector.load %arg10[%c0_22, %c0_23] : memref<1x32xbf16, #tpu.memory_space<vmem>>, vector<1x32xbf16>
    %34 = arith.extf %33 : vector<1x32xbf16> to vector<1x32xf32>
    %35 = vector.broadcast %34 : vector<1x32xf32> to vector<8x32xf32>
    %36 = arith.addf %32, %35 : vector<8x32xf32>
    %37 = math.tanh %36 : vector<8x32xf32>
    %38 = tpu.concatenate %21, %29, %37 in 1 : vector<8x32xf32>, vector<8x32xf32>, vector<8x32xf32> -> vector<8x96xf32>
    %39 = arith.truncf %38 : vector<8x96xf32> to vector<8x96xbf16>
    %c0_24 = arith.constant 0 : index
    %c0_25 = arith.constant 0 : index
    %40 = vector.load %arg11[%c0_24, %c0_25] : memref<96x128xbf16, #tpu.memory_space<vmem>>, vector<96x128xbf16>
    %cst_26 = arith.constant dense<0.000000e+00> : vector<8x128xf32>
    %41 = tpu.matmul %39, %40, %cst_26 {dimension_numbers = #tpu.dot_dimension_numbers<[1], [0], [0], [1], [0, 0, 1, 1], [], []>} : vector<8x96xbf16>, vector<96x128xbf16>, vector<8x128xf32> -> vector<8x128xf32>
    %c0_27 = arith.constant 0 : index
    %c0_28 = arith.constant 0 : index
    %42 = vector.load %arg12[%c0_27, %c0_28] : memref<1x128xbf16, #tpu.memory_space<vmem>>, vector<1x128xbf16>
    %43 = arith.extf %42 : vector<1x128xbf16> to vector<1x128xf32>
    %44 = vector.broadcast %43 : vector<1x128xf32> to vector<8x128xf32>
    %45 = arith.addf %41, %44 : vector<8x128xf32>
    %c0_29 = arith.constant 0 : index
    %c0_30 = arith.constant 0 : index
    %46 = vector.load %arg14[%c0_29, %c0_30] : memref<8x96xf32, #tpu.memory_space<vmem>>, vector<8x96xf32>
    tpu.vector_store %arg14[%c0_29, %c0_30], %38 {strides = array<i32>} : memref<8x96xf32, #tpu.memory_space<vmem>>, vector<8x96xf32>,
    %c0_31 = arith.constant 0 : index
    %c0_32 = arith.constant 0 : index
    %47 = vector.load %arg13[%c0_31, %c0_32] : memref<8x128xf32, #tpu.memory_space<vmem>>, vector<8x128xf32>
    tpu.vector_store %arg13[%c0_31, %c0_32], %45 {strides = array<i32>} : memref<8x128xf32, #tpu.memory_space<vmem>>, vector<8x128xf32>,
    return
  }
  func.func @transform_0(%arg0: i32) -> (i32, i32, i32) {
    %c0_i32 = arith.constant 0 : i32
    %c0_i32_0 = arith.constant 0 : i32
    %c0_i32_1 = arith.constant 0 : i32
    return %arg0, %c0_i32, %c0_i32_0 : i32, i32, i32
  }
  func.func @transform_1(%arg0: i32) -> (i32, i32) {
    %c0_i32 = arith.constant 0 : i32
    %c0_i32_0 = arith.constant 0 : i32
    return %arg0, %c0_i32 : i32, i32
  }
  func.func @transform_2(%arg0: i32) -> (i32, i32, i32) {
    %c0_i32 = arith.constant 0 : i32
    %c0_i32_0 = arith.constant 0 : i32
    %c0_i32_1 = arith.constant 0 : i32
    return %arg0, %c0_i32, %c0_i32_0 : i32, i32, i32
  }
  func.func @transform_3(%arg0: i32) -> (i32, i32) {
    %c0_i32 = arith.constant 0 : i32
    %c0_i32_0 = arith.constant 0 : i32
    return %arg0, %c0_i32 : i32, i32
  }
  func.func @transform_4(%arg0: i32) -> (i32, i32) {
    %c0_i32 = arith.constant 0 : i32
    %c0_i32_0 = arith.constant 0 : i32
    %c0_i32_1 = arith.constant 0 : i32
    return %c0_i32, %c0_i32_0 : i32, i32
  }
  func.func @transform_5(%arg0: i32) -> (i32, i32) {
    %c0_i32 = arith.constant 0 : i32
    %c0_i32_0 = arith.constant 0 : i32
    %c0_i32_1 = arith.constant 0 : i32
    return %c0_i32, %c0_i32_0 : i32, i32
  }
  func.func @transform_6(%arg0: i32) -> (i32, i32) {
    %c0_i32 = arith.constant 0 : i32
    %c0_i32_0 = arith.constant 0 : i32
    %c0_i32_1 = arith.constant 0 : i32
    return %c0_i32, %c0_i32_0 : i32, i32
  }
  func.func @transform_7(%arg0: i32) -> (i32, i32) {
    %c0_i32 = arith.constant 0 : i32
    %c0_i32_0 = arith.constant 0 : i32
    %c0_i32_1 = arith.constant 0 : i32
    return %c0_i32, %c0_i32_0 : i32, i32
  }
  func.func @transform_8(%arg0: i32) -> (i32, i32) {
    %c0_i32 = arith.constant 0 : i32
    %c0_i32_0 = arith.constant 0 : i32
    %c0_i32_1 = arith.constant 0 : i32
    return %c0_i32, %c0_i32_0 : i32, i32
  }
  func.func @transform_9(%arg0: i32) -> (i32, i32) {
    %c0_i32 = arith.constant 0 : i32
    %c0_i32_0 = arith.constant 0 : i32
    %c0_i32_1 = arith.constant 0 : i32
    return %c0_i32, %c0_i32_0 : i32, i32
  }
  func.func @transform_10(%arg0: i32) -> (i32, i32) {
    %c0_i32 = arith.constant 0 : i32
    %c0_i32_0 = arith.constant 0 : i32
    %c0_i32_1 = arith.constant 0 : i32
    return %c0_i32, %c0_i32_0 : i32, i32
  }
  func.func @transform_11(%arg0: i32) -> (i32, i32) {
    %c0_i32 = arith.constant 0 : i32
    %c0_i32_0 = arith.constant 0 : i32
    %c0_i32_1 = arith.constant 0 : i32
    return %c0_i32, %c0_i32_0 : i32, i32
  }
  func.func @transform_12(%arg0: i32) -> (i32, i32) {
    %c0_i32 = arith.constant 0 : i32
    %c0_i32_0 = arith.constant 0 : i32
    return %arg0, %c0_i32 : i32, i32
  }
  func.func @transform_13(%arg0: i32) -> (i32, i32) {
    %c0_i32 = arith.constant 0 : i32
    %c0_i32_0 = arith.constant 0 : i32
    return %arg0, %c0_i32 : i32, i32
  }
}

</mosaic_0001>

<llo_original>
// kernel: rebert_adapter_head.1
$region0: #{rebert_adapter_head.1}
  #allocation0 [shape = 'u32[]', space=smem, size = 0x4, offset = 0x4, fixed_abs, tag = 'smem constant byte address 0x4 - core index']
  #allocation1 [shape = 'u32[144,128]{1,0:T(1,128)}', space=vmem, size = 0x12000, scoped, tag = 'internal scratch']
  %s0 = inlined_call_operand.vmem [shape: bf16[16,16,32], index: 0, kind: input, shape index: {}]
  %s1 = inlined_call_operand.vmem [shape: bf16[16,32], index: 1, kind: input, shape index: {}]
  %s2 = inlined_call_operand.vmem [shape: bf16[16,2,16], index: 2, kind: input, shape index: {}]
  %s3 = inlined_call_operand.vmem [shape: f32[16,2], index: 3, kind: input, shape index: {}]
  %s4 = inlined_call_operand.vmem [shape: bf16[32,32], index: 4, kind: input, shape index: {}]
  %s5 = inlined_call_operand.vmem [shape: bf16[1,32], index: 5, kind: input, shape index: {}]
  %s6 = inlined_call_operand.vmem [shape: bf16[32,32], index: 6, kind: input, shape index: {}]
  %s7 = inlined_call_operand.vmem [shape: bf16[1,32], index: 7, kind: input, shape index: {}]
  %s8 = inlined_call_operand.vmem [shape: bf16[32,32], index: 8, kind: input, shape index: {}]
  %s9 = inlined_call_operand.vmem [shape: bf16[1,32], index: 9, kind: input, shape index: {}]
  %s10 = inlined_call_operand.vmem [shape: bf16[96,128], index: 10, kind: input, shape index: {}]
  %s11 = inlined_call_operand.vmem [shape: bf16[1,128], index: 11, kind: input, shape index: {}]
  %s12 = inlined_call_operand.vmem [shape: f32[16,128], index: 12, kind: output, shape index: {0}]
  %s13 = inlined_call_operand.vmem [shape: f32[16,96], index: 13, kind: output, shape index: {1}]
  %14 = xla_tuple %s12, %s13
  %s15 = sld [smem:[#allocation0]]
  $region89: #{rebert_adapter_head.1} parent=0
    _
  %s17 = ssub.s32 1, %s15
  %s18 = scalar_select 0, %s17, %s15
  loop: start=0, step=1, limit=4
  $region2: #{rebert_adapter_head.1} parent=0 // loop_pre_header
    _
  $region3: #{rebert_adapter_head.1} parent=0 // loop_header
    %s20 = sphi 0, %s24
    %p21 = scmp.ge.s32.totalorder %s20, 4
    %s30 = sphi 0, %s32
    %s33 = sphi 0, %s30
    %s34 = sphi 0, %s33
    %s50 = sphi 0, %s34
    %s56 = sphi 0, %s58
    %s59 = sphi 0, %s56
    %s60 = sphi 0, %s59
    %s76 = sphi 0, %s60
    %s82 = sphi 0, %s84
    %s85 = sphi 0, %s82
    %s86 = sphi 0, %s85
    %s102 = sphi 0, %s86
    %s108 = sphi 0, %s110
    %s111 = sphi 0, %s108
    %s112 = sphi 0, %s111
    %s128 = sphi 0, %s112
    %s132 = sphi 0, %s132
    %s134 = sphi 0, %s132
    %s135 = sphi 0, %s134
    %s149 = sphi 0, %s135
    %s153 = sphi 0, %s153
    %s155 = sphi 0, %s153
    %s156 = sphi 0, %s155
    %s170 = sphi 0, %s156
    %s174 = sphi 0, %s174
    %s176 = sphi 0, %s174
    %s177 = sphi 0, %s176
    %s191 = sphi 0, %s177
    %s195 = sphi 0, %s195
    %s197 = sphi 0, %s195
    %s198 = sphi 0, %s197
    %s212 = sphi 0, %s198
    %s216 = sphi 0, %s216
    %s218 = sphi 0, %s216
    %s219 = sphi 0, %s218
    %s233 = sphi 0, %s219
    %s237 = sphi 0, %s237
    %s239 = sphi 0, %s237
    %s240 = sphi 0, %s239
    %s254 = sphi 0, %s240
    %s258 = sphi 0, %s258
    %s260 = sphi 0, %s258
    %s261 = sphi 0, %s260
    %s275 = sphi 0, %s261
    %s279 = sphi 0, %s279
    %s281 = sphi 0, %s279
    %s282 = sphi 0, %s281
    %s296 = sphi 0, %s282
    %s302 = sphi 0, %s304
    %s305 = sphi 0, %s302
    %s306 = sphi 0, %s305
    %s322 = sphi 0, %s306
    %s328 = sphi 0, %s330
    %s331 = sphi 0, %s328
    %s332 = sphi 0, %s331
    %s348 = sphi 0, %s332
  $region4: #{rebert_adapter_head.1} parent=0 // loop_header_branch
    %23 = sbr.rel (%p21) target = $region8
  $region5: #{rebert_adapter_head.1} parent=0 // loop_body
    %s25 = ssub.s32 %s20, 1
    %s26 = ssub.s32 %s20, 2
    %s27 = sadd.s32 %s20, 1
    %s28 = ssub.s32 %s20, %s27
    %p29 = scmp.eq.s32.totalorder %s28, 0
    %s31 = sadd.s32 %s30, 1
    %s32 = scalar_select %p29, %s30, %s31
    %p35 = pneg %p29
    %p36 = scmp.eq.s32.totalorder %s20, 1
    %p37 = por %p35, %p36
    %p38 = scmp.ne.s32.totalorder %s30, %s33
    %p39 = scmp.eq.s32.totalorder %s20, 0
    %p40 = por %p38, %p39
    %p41 = scmp.ne.s32.totalorder %s30, %s33
    %p42 = scmp.eq.s32.totalorder %s25, 1
    %p43 = por %p41, %p42
    %p44 = scmp.ne.s32.totalorder %s33, %s34
    %p45 = scmp.eq.s32.totalorder %s25, 0
    %p46 = por %p44, %p45
    %p47 = scmp.ne.s32.totalorder %s33, %s34
    %p48 = scmp.eq.s32.totalorder %s26, 1
    %p49 = por %p47, %p48
    %p51 = scmp.ne.s32.totalorder %s34, %s50
    %p52 = scmp.eq.s32.totalorder %s26, 0
    %p53 = por %p51, %p52
    %s54 = ssub.s32 %s20, %s27
    %p55 = scmp.eq.s32.totalorder %s54, 0
    %s57 = sadd.s32 %s56, 1
    %s58 = scalar_select %p55, %s56, %s57
    %p61 = pneg %p55
    %p62 = scmp.eq.s32.totalorder %s20, 1
    %p63 = por %p61, %p62
    %p64 = scmp.ne.s32.totalorder %s56, %s59
    %p65 = scmp.eq.s32.totalorder %s20, 0
    %p66 = por %p64, %p65
    %p67 = scmp.ne.s32.totalorder %s56, %s59
    %p68 = scmp.eq.s32.totalorder %s25, 1
    %p69 = por %p67, %p68
    %p70 = scmp.ne.s32.totalorder %s59, %s60
    %p71 = scmp.eq.s32.totalorder %s25, 0
    %p72 = por %p70, %p71
    %p73 = scmp.ne.s32.totalorder %s59, %s60
    %p74 = scmp.eq.s32.totalorder %s26, 1
    %p75 = por %p73, %p74
    %p77 = scmp.ne.s32.totalorder %s60, %s76
    %p78 = scmp.eq.s32.totalorder %s26, 0
    %p79 = por %p77, %p78
    %s80 = ssub.s32 %s20, %s27
    %p81 = scmp.eq.s32.totalorder %s80, 0
    %s83 = sadd.s32 %s82, 1
    %s84 = scalar_select %p81, %s82, %s83
    %p87 = pneg %p81
    %p88 = scmp.eq.s32.totalorder %s20, 1
    %p89 = por %p87, %p88
    %p90 = scmp.ne.s32.totalorder %s82, %s85
    %p91 = scmp.eq.s32.totalorder %s20, 0
    %p92 = por %p90, %p91
    %p93 = scmp.ne.s32.totalorder %s82, %s85
    %p94 = scmp.eq.s32.totalorder %s25, 1
    %p95 = por %p93, %p94
    %p96 = scmp.ne.s32.totalorder %s85, %s86
    %p97 = scmp.eq.s32.totalorder %s25, 0
    %p98 = por %p96, %p97
    %p99 = scmp.ne.s32.totalorder %s85, %s86
    %p100 = scmp.eq.s32.totalorder %s26, 1
    %p101 = por %p99, %p100
    %p103 = scmp.ne.s32.totalorder %s86, %s102
    %p104 = scmp.eq.s32.totalorder %s26, 0
    %p105 = por %p103, %p104
    %s106 = ssub.s32 %s20, %s27
    %p107 = scmp.eq.s32.totalorder %s106, 0
    %s109 = sadd.s32 %s108, 1
    %s110 = scalar_select %p107, %s108, %s109
    %p113 = pneg %p107
    %p114 = scmp.eq.s32.totalorder %s20, 1
    %p115 = por %p113, %p114
    %p116 = scmp.ne.s32.totalorder %s108, %s111
    %p117 = scmp.eq.s32.totalorder %s20, 0
    %p118 = por %p116, %p117
    %p119 = scmp.ne.s32.totalorder %s108, %s111
    %p120 = scmp.eq.s32.totalorder %s25, 1
    %p121 = por %p119, %p120
    %p122 = scmp.ne.s32.totalorder %s111, %s112
    %p123 = scmp.eq.s32.totalorder %s25, 0
    %p124 = por %p122, %p123
    %p125 = scmp.ne.s32.totalorder %s111, %s112
    %p126 = scmp.eq.s32.totalorder %s26, 1
    %p127 = por %p125, %p126
    %p129 = scmp.ne.s32.totalorder %s112, %s128
    %p130 = scmp.eq.s32.totalorder %s26, 0
    %p131 = por %p129, %p130
    %s133 = sadd.s32 %s132, 1
    %p136 = scmp.eq.s32.totalorder %s20, 1
    %p137 = scmp.ne.s32.totalorder %s132, %s134
    %p138 = scmp.eq.s32.totalorder %s20, 0
    %p139 = por %p137, %p138
    %p140 = scmp.ne.s32.totalorder %s132, %s134
    %p141 = scmp.eq.s32.totalorder %s25, 1
    %p142 = por %p140, %p141
    %p143 = scmp.ne.s32.totalorder %s134, %s135
    %p144 = scmp.eq.s32.totalorder %s25, 0
    %p145 = por %p143, %p144
    %p146 = scmp.ne.s32.totalorder %s134, %s135
    %p147 = scmp.eq.s32.totalorder %s26, 1
    %p148 = por %p146, %p147
    %p150 = scmp.ne.s32.totalorder %s135, %s149
    %p151 = scmp.eq.s32.totalorder %s26, 0
    %p152 = por %p150, %p151
    %s154 = sadd.s32 %s153, 1
    %p157 = scmp.eq.s32.totalorder %s20, 1
    %p158 = scmp.ne.s32.totalorder %s153, %s155
    %p159 = scmp.eq.s32.totalorder %s20, 0
    %p160 = por %p158, %p159
    %p161 = scmp.ne.s32.totalorder %s153, %s155
    %p162 = scmp.eq.s32.totalorder %s25, 1
    %p163 = por %p161, %p162
    %p164 = scmp.ne.s32.totalorder %s155, %s156
    %p165 = scmp.eq.s32.totalorder %s25, 0
    %p166 = por %p164, %p165
    %p167 = scmp.ne.s32.totalorder %s155, %s156
    %p168 = scmp.eq.s32.totalorder %s26, 1
    %p169 = por %p167, %p168
    %p171 = scmp.ne.s32.totalorder %s156, %s170
    %p172 = scmp.eq.s32.totalorder %s26, 0
    %p173 = por %p171, %p172
    %s175 = sadd.s32 %s174, 1
    %p178 = scmp.eq.s32.totalorder %s20, 1
    %p179 = scmp.ne.s32.totalorder %s174, %s176
    %p180 = scmp.eq.s32.totalorder %s20, 0
    %p181 = por %p179, %p180
    %p182 = scmp.ne.s32.totalorder %s174, %s176
    %p183 = scmp.eq.s32.totalorder %s25, 1
    %p184 = por %p182, %p183
    %p185 = scmp.ne.s32.totalorder %s176, %s177
    %p186 = scmp.eq.s32.totalorder %s25, 0
    %p187 = por %p185, %p186
    %p188 = scmp.ne.s32.totalorder %s176, %s177
    %p189 = scmp.eq.s32.totalorder %s26, 1
    %p190 = por %p188, %p189
    %p192 = scmp.ne.s32.totalorder %s177, %s191
    %p193 = scmp.eq.s32.totalorder %s26, 0
    %p194 = por %p192, %p193
    %s196 = sadd.s32 %s195, 1
    %p199 = scmp.eq.s32.totalorder %s20, 1
    %p200 = scmp.ne.s32.totalorder %s195, %s197
    %p201 = scmp.eq.s32.totalorder %s20, 0
    %p202 = por %p200, %p201
    %p203 = scmp.ne.s32.totalorder %s195, %s197
    %p204 = scmp.eq.s32.totalorder %s25, 1
    %p205 = por %p203, %p204
    %p206 = scmp.ne.s32.totalorder %s197, %s198
    %p207 = scmp.eq.s32.totalorder %s25, 0
    %p208 = por %p206, %p207
    %p209 = scmp.ne.s32.totalorder %s197, %s198
    %p210 = scmp.eq.s32.totalorder %s26, 1
    %p211 = por %p209, %p210
    %p213 = scmp.ne.s32.totalorder %s198, %s212
    %p214 = scmp.eq.s32.totalorder %s26, 0
    %p215 = por %p213, %p214
    %s217 = sadd.s32 %s216, 1
    %p220 = scmp.eq.s32.totalorder %s20, 1
    %p221 = scmp.ne.s32.totalorder %s216, %s218
    %p222 = scmp.eq.s32.totalorder %s20, 0
    %p223 = por %p221, %p222
    %p224 = scmp.ne.s32.totalorder %s216, %s218
    %p225 = scmp.eq.s32.totalorder %s25, 1
    %p226 = por %p224, %p225
    %p227 = scmp.ne.s32.totalorder %s218, %s219
    %p228 = scmp.eq.s32.totalorder %s25, 0
    %p229 = por %p227, %p228
    %p230 = scmp.ne.s32.totalorder %s218, %s219
    %p231 = scmp.eq.s32.totalorder %s26, 1
    %p232 = por %p230, %p231
    %p234 = scmp.ne.s32.totalorder %s219, %s233
    %p235 = scmp.eq.s32.totalorder %s26, 0
    %p236 = por %p234, %p235
    %s238 = sadd.s32 %s237, 1
    %p241 = scmp.eq.s32.totalorder %s20, 1
    %p242 = scmp.ne.s32.totalorder %s237, %s239
    %p243 = scmp.eq.s32.totalorder %s20, 0
    %p244 = por %p242, %p243
    %p245 = scmp.ne.s32.totalorder %s237, %s239
    %p246 = scmp.eq.s32.totalorder %s25, 1
    %p247 = por %p245, %p246
    %p248 = scmp.ne.s32.totalorder %s239, %s240
    %p249 = scmp.eq.s32.totalorder %s25, 0
    %p250 = por %p248, %p249
    %p251 = scmp.ne.s32.totalorder %s239, %s240
    %p252 = scmp.eq.s32.totalorder %s26, 1
    %p253 = por %p251, %p252
    %p255 = scmp.ne.s32.totalorder %s240, %s254
    %p256 = scmp.eq.s32.totalorder %s26, 0
    %p257 = por %p255, %p256
    %s259 = sadd.s32 %s258, 1
    %p262 = scmp.eq.s32.totalorder %s20, 1
    %p263 = scmp.ne.s32.totalorder %s258, %s260
    %p264 = scmp.eq.s32.totalorder %s20, 0
    %p265 = por %p263, %p264
    %p266 = scmp.ne.s32.totalorder %s258, %s260
    %p267 = scmp.eq.s32.totalorder %s25, 1
    %p268 = por %p266, %p267
    %p269 = scmp.ne.s32.totalorder %s260, %s261
    %p270 = scmp.eq.s32.totalorder %s25, 0
    %p271 = por %p269, %p270
    %p272 = scmp.ne.s32.totalorder %s260, %s261
    %p273 = scmp.eq.s32.totalorder %s26, 1
    %p274 = por %p272, %p273
    %p276 = scmp.ne.s32.totalorder %s261, %s275
    %p277 = scmp.eq.s32.totalorder %s26, 0
    %p278 = por %p276, %p277
    %s280 = sadd.s32 %s279, 1
    %p283 = scmp.eq.s32.totalorder %s20, 1
    %p284 = scmp.ne.s32.totalorder %s279, %s281
    %p285 = scmp.eq.s32.totalorder %s20, 0
    %p286 = por %p284, %p285
    %p287 = scmp.ne.s32.totalorder %s279, %s281
    %p288 = scmp.eq.s32.totalorder %s25, 1
    %p289 = por %p287, %p288
    %p290 = scmp.ne.s32.totalorder %s281, %s282
    %p291 = scmp.eq.s32.totalorder %s25, 0
    %p292 = por %p290, %p291
    %p293 = scmp.ne.s32.totalorder %s281, %s282
    %p294 = scmp.eq.s32.totalorder %s26, 1
    %p295 = por %p293, %p294
    %p297 = scmp.ne.s32.totalorder %s282, %s296
    %p298 = scmp.eq.s32.totalorder %s26, 0
    %p299 = por %p297, %p298
    %s300 = ssub.s32 %s20, %s27
    %p301 = scmp.eq.s32.totalorder %s300, 0
    %s303 = sadd.s32 %s302, 1
    %s304 = scalar_select %p301, %s302, %s303
    %p307 = pneg %p301
    %p308 = scmp.eq.s32.totalorder %s20, 1
    %p309 = por %p307, %p308
    %p310 = scmp.ne.s32.totalorder %s302, %s305
    %p311 = scmp.eq.s32.totalorder %s20, 0
    %p312 = por %p310, %p311
    %p313 = scmp.ne.s32.totalorder %s302, %s305
    %p314 = scmp.eq.s32.totalorder %s25, 1
    %p315 = por %p313, %p314
    %p316 = scmp.ne.s32.totalorder %s305, %s306
    %p317 = scmp.eq.s32.totalorder %s25, 0
    %p318 = por %p316, %p317
    %p319 = scmp.ne.s32.totalorder %s305, %s306
    %p320 = scmp.eq.s32.totalorder %s26, 1
    %p321 = por %p319, %p320
    %p323 = scmp.ne.s32.totalorder %s306, %s322
    %p324 = scmp.eq.s32.totalorder %s26, 0
    %p325 = por %p323, %p324
    %s326 = ssub.s32 %s20, %s27
    %p327 = scmp.eq.s32.totalorder %s326, 0
    %s329 = sadd.s32 %s328, 1
    %s330 = scalar_select %p327, %s328, %s329
    %p333 = pneg %p327
    %p334 = scmp.eq.s32.totalorder %s20, 1
    %p335 = por %p333, %p334
    %p336 = scmp.ne.s32.totalorder %s328, %s331
    %p337 = scmp.eq.s32.totalorder %s20, 0
    %p338 = por %p336, %p337
    %p339 = scmp.ne.s32.totalorder %s328, %s331
    %p340 = scmp.eq.s32.totalorder %s25, 1
    %p341 = por %p339, %p340
    %p342 = scmp.ne.s32.totalorder %s331, %s332
    %p343 = scmp.eq.s32.totalorder %s25, 0
    %p344 = por %p342, %p343
    %p345 = scmp.ne.s32.totalorder %s331, %s332
    %p346 = scmp.eq.s32.totalorder %s26, 1
    %p347 = por %p345, %p346
    %p349 = scmp.ne.s32.totalorder %s332, %s348
    %p350 = scmp.eq.s32.totalorder %s26, 0
    %p351 = por %p349, %p350
    %p352 = scmp.le.s32.totalorder 1, %s20
    %p353 = scmp.lt.s32.totalorder %s20, 3
    %p354 = pnand %p352, %p353
    %p355 = pneg %p354
    // Predicated region
    $region9: #{rebert_adapter_head.1} parent=5 // pred_check
      _
    $region10: #{rebert_adapter_head.1} parent=5 // pred_check_branch
      %357 = sbr.rel (%p354) target = $region12
    $region11: #{rebert_adapter_head.1} parent=5 // pred_region
      %s358 = ssub.s32 %s20, 1
      // Predicated region
      $region13: #{rebert_adapter_head.1} parent=11 // pred_check
        %p359 = pneg %p145
      $region14: #{rebert_adapter_head.1} parent=11 // pred_check_branch
        %361 = sbr.rel (%p359) target = $region16
      $region15: #{rebert_adapter_head.1} parent=11 // pred_region
        _
      $region16: #{rebert_adapter_head.1} parent=11 // pred_fallthru
        _
      // Predicated region
      $region17: #{rebert_adapter_head.1} parent=11 // pred_check
        %p362 = pneg %p166
      $region18: #{rebert_adapter_head.1} parent=11 // pred_check_branch
        %364 = sbr.rel (%p362) target = $region20
      $region19: #{rebert_adapter_head.1} parent=11 // pred_region
        _
      $region20: #{rebert_adapter_head.1} parent=11 // pred_fallthru
        _
      // Predicated region
      $region21: #{rebert_adapter_head.1} parent=11 // pred_check
        %p365 = pneg %p187
      $region22: #{rebert_adapter_head.1} parent=11 // pred_check_branch
        %367 = sbr.rel (%p365) target = $region24
      $region23: #{rebert_adapter_head.1} parent=11 // pred_region
        _
      $region24: #{rebert_adapter_head.1} parent=11 // pred_fallthru
        _
      // Predicated region
      $region25: #{rebert_adapter_head.1} parent=11 // pred_check
        %p368 = pneg %p208
      $region26: #{rebert_adapter_head.1} parent=11 // pred_check_branch
        %370 = sbr.rel (%p368) target = $region28
      $region27: #{rebert_adapter_head.1} parent=11 // pred_region
        _
      $region28: #{rebert_adapter_head.1} parent=11 // pred_fallthru
        _
      // Predicated region
      $region29: #{rebert_adapter_head.1} parent=11 // pred_check
        %p371 = pneg %p229
      $region30: #{rebert_adapter_head.1} parent=11 // pred_check_branch
        %373 = sbr.rel (%p371) target = $region32
      $region31: #{rebert_adapter_head.1} parent=11 // pred_region
        _
      $region32: #{rebert_adapter_head.1} parent=11 // pred_fallthru
        _
      // Predicated region
      $region33: #{rebert_adapter_head.1} parent=11 // pred_check
        %p374 = pneg %p250
      $region34: #{rebert_adapter_head.1} parent=11 // pred_check_branch
        %376 = sbr.rel (%p374) target = $region36
      $region35: #{rebert_adapter_head.1} parent=11 // pred_region
        _
      $region36: #{rebert_adapter_head.1} parent=11 // pred_fallthru
        _
      // Predicated region
      $region37: #{rebert_adapter_head.1} parent=11 // pred_check
        %p377 = pneg %p271
      $region38: #{rebert_adapter_head.1} parent=11 // pred_check_branch
        %379 = sbr.rel (%p377) target = $region40
      $region39: #{rebert_adapter_head.1} parent=11 // pred_region
        _
      $region40: #{rebert_adapter_head.1} parent=11 // pred_fallthru
        _
      // Predicated region
      $region41: #{rebert_adapter_head.1} parent=11 // pred_check
        %p380 = pneg %p292
      $region42: #{rebert_adapter_head.1} parent=11 // pred_check_branch
        %382 = sbr.rel (%p380) target = $region44
      $region43: #{rebert_adapter_head.1} parent=11 // pred_region
        _
      $region44: #{rebert_adapter_head.1} parent=11 // pred_fallthru
        _
    $region12: #{rebert_adapter_head.1} parent=5 // pred_fallthru
      _
    %p383 = scmp.lt.s32.totalorder %s20, 2
    // Predicated region
    $region45: #{rebert_adapter_head.1} parent=5 // pred_check
      %p384 = pneg %p383
    $region46: #{rebert_adapter_head.1} parent=5 // pred_check_branch
      %386 = sbr.rel (%p384) target = $region48
    $region47: #{rebert_adapter_head.1} parent=5 // pred_region
      // Predicated region
      $region49: #{rebert_adapter_head.1} parent=47 // pred_check
        %p387 = pneg %p40
      $region50: #{rebert_adapter_head.1} parent=47 // pred_check_branch
        %389 = sbr.rel (%p387) target = $region52
      $region51: #{rebert_adapter_head.1} parent=47 // pred_region
        %s390 = smul.u32 8, %s20
        %p391 = scmp.lt.s32.totalorder %s390, 15
        %s392 = scalar_select %p391, %s390, 15
        %s393 = smul.addr %s392, 2
        %s394 = smul.addr %s393, 4
        %s395 = scalar_lea.vmem %s0, %s394
        %s396 = smul.u32 8, %s20
      $region52: #{rebert_adapter_head.1} parent=47 // pred_fallthru
        _
      // Predicated region
      $region53: #{rebert_adapter_head.1} parent=47 // pred_check
        %p397 = pneg %p66
      $region54: #{rebert_adapter_head.1} parent=47 // pred_check_branch
        %399 = sbr.rel (%p397) target = $region56
      $region55: #{rebert_adapter_head.1} parent=47 // pred_region
        %p400 = scmp.lt.s32.totalorder %s20, 1
        %s401 = scalar_select %p400, %s20, 1
        %s402 = smul.addr %s401, 4
        %s403 = scalar_lea.vmem %s1, %s402
      $region56: #{rebert_adapter_head.1} parent=47 // pred_fallthru
        _
      // Predicated region
      $region57: #{rebert_adapter_head.1} parent=47 // pred_check
        %p404 = pneg %p92
      $region58: #{rebert_adapter_head.1} parent=47 // pred_check_branch
        %406 = sbr.rel (%p404) target = $region60
      $region59: #{rebert_adapter_head.1} parent=47 // pred_region
        %s407 = smul.u32 8, %s20
        %p408 = scmp.lt.s32.totalorder %s407, 15
        %s409 = scalar_select %p408, %s407, 15
        %s410 = scalar_lea.vmem %s2, %s409
        %s411 = smul.u32 8, %s20
      $region60: #{rebert_adapter_head.1} parent=47 // pred_fallthru
        _
      // Predicated region
      $region61: #{rebert_adapter_head.1} parent=47 // pred_check
        %p412 = pneg %p118
      $region62: #{rebert_adapter_head.1} parent=47 // pred_check_branch
        %414 = sbr.rel (%p412) target = $region64
      $region63: #{rebert_adapter_head.1} parent=47 // pred_region
        %p415 = scmp.lt.s32.totalorder %s20, 1
        %s416 = scalar_select %p415, %s20, 1
        %s417 = smul.addr %s416, 8
        %s418 = scalar_lea.vmem %s3, %s417
      $region64: #{rebert_adapter_head.1} parent=47 // pred_fallthru
        _
    $region48: #{rebert_adapter_head.1} parent=5 // pred_fallthru
      _
    %p419 = scmp.le.s32.totalorder 1, %s20
    %p420 = scmp.lt.s32.totalorder %s20, 3
    %p421 = pnand %p419, %p420
    %p422 = pneg %p421
    // Predicated region
    $region65: #{rebert_adapter_head.1} parent=5 // pred_check
      _
    $region66: #{rebert_adapter_head.1} parent=5 // pred_check_branch
      %424 = sbr.rel (%p421) target = $region68
    $region67: #{rebert_adapter_head.1} parent=5 // pred_region
      %s425 = ssub.s32 %s20, 1
      %s426 = smul.u32 8, %s25
      %p427 = scmp.lt.s32.totalorder %s426, 15
      %s428 = scalar_select %p427, %s426, 15
      %s429 = smul.addr %s428, 2
      %s430 = smul.addr %s429, 4
      %s431 = scalar_lea.vmem %s0, %s430
      %p432 = pneg %p46
      %p433 = pneg %p43
      %p434 = scmp.lt.s32.totalorder %s25, 1
      %s435 = scalar_select %p434, %s25, 1
      %s436 = smul.addr %s435, 4
      %s437 = scalar_lea.vmem %s1, %s436
      %p438 = pneg %p72
      %p439 = pneg %p69
      %s440 = smul.u32 8, %s25
      %p441 = scmp.lt.s32.totalorder %s440, 15
      %s442 = scalar_select %p441, %s440, 15
      %s443 = scalar_lea.vmem %s2, %s442
      %p444 = pneg %p98
      %p445 = pneg %p95
      %p446 = scmp.lt.s32.totalorder %s25, 1
      %s447 = scalar_select %p446, %s25, 1
      %s448 = smul.addr %s447, 8
      %s449 = scalar_lea.vmem %s3, %s448
      %p450 = pneg %p124
      %p451 = pneg %p121
      %p452 = pneg %p145
      %p453 = pneg %p142
      %p454 = pneg %p166
      %p455 = pneg %p163
      %p456 = pneg %p187
      %p457 = pneg %p184
      %p458 = pneg %p208
      %p459 = pneg %p205
      %p460 = pneg %p229
      %p461 = pneg %p226
      %p462 = pneg %p250
      %p463 = pneg %p247
      %p464 = pneg %p271
      %p465 = pneg %p268
      %p466 = pneg %p292
      %p467 = pneg %p289
      %p468 = pneg %p318
      %p469 = pneg %p315
      %p470 = scmp.lt.s32.totalorder %s25, 1
      %s471 = scalar_select %p470, %s25, 1
      %s472 = smul.addr %s471, 8
      %s473 = scalar_lea.vmem %s12, %s472
      %p474 = pneg %p344
      %p475 = pneg %p341
      %p476 = scmp.lt.s32.totalorder %s25, 1
      %s477 = scalar_select %p476, %s25, 1
      %s478 = smul.addr %s477, 8
      %s479 = scalar_lea.vmem %s13, %s478
      %s480 = smul.u32 8, %s25
      %p481 = scmp.lt.s32.totalorder %s480, 15
      %s482 = scalar_select %p481, %s480, 15
      %s483 = smul.addr %s482, 2
      %s484 = smul.addr %s483, 4
      %s485 = scalar_lea.vmem %s0, %s484
      %s486 = smul.u32 8, %s25
      %p487 = scmp.lt.s32.totalorder %s25, 1
      %s488 = scalar_select %p487, %s25, 1
      %s489 = smul.addr %s488, 4
      %s490 = scalar_lea.vmem %s1, %s489
      %s491 = smul.u32 8, %s25
      %p492 = scmp.lt.s32.totalorder %s491, 15
      %s493 = scalar_select %p492, %s491, 15
      %s494 = scalar_lea.vmem %s2, %s493
      %s495 = smul.u32 8, %s25
      %p496 = scmp.lt.s32.totalorder %s25, 1
      %s497 = scalar_select %p496, %s25, 1
      %s498 = smul.addr %s497, 8
      %s499 = scalar_lea.vmem %s3, %s498
      %p500 = scmp.lt.s32.totalorder %s25, 1
      %s501 = scalar_select %p500, %s25, 1
      %s502 = smul.addr %s501, 8
      %s503 = scalar_lea.vmem %s12, %s502
      %p504 = scmp.lt.s32.totalorder %s25, 1
      %s505 = scalar_select %p504, %s25, 1
      %s506 = smul.addr %s505, 8
      %s507 = scalar_lea.vmem %s13, %s506
      %v509 = vld [vmem:[%s485] sm:$0xf]
      %v510 = vld [vmem:[%s485 + $0x4] sm:$0xf]
      %v511 = vld [vmem:[%s485 + $0x8] sm:$0xf]
      %v512 = vld [vmem:[%s485 + $0xc] sm:$0xf]
      %v513 = vld [vmem:[%s485 + $0x10] sm:$0xf]
      %v514 = vld [vmem:[%s485 + $0x14] sm:$0xf]
      %v515 = vld [vmem:[%s485 + $0x18] sm:$0xf]
      %v516 = vld [vmem:[%s485 + $0x1c] sm:$0xf]
      %v517 = vld [vmem:[%s485 + $0x20] sm:$0xf]
      %v518 = vld [vmem:[%s485 + $0x24] sm:$0xf]
      %v519 = vld [vmem:[%s485 + $0x28] sm:$0xf]
      %v520 = vld [vmem:[%s485 + $0x2c] sm:$0xf]
      %v521 = vld [vmem:[%s485 + $0x30] sm:$0xf]
      %v522 = vld [vmem:[%s485 + $0x34] sm:$0xf]
      %v523 = vld [vmem:[%s485 + $0x38] sm:$0xf]
      %v524 = vld [vmem:[%s485 + $0x3c] sm:$0xf]
      %v525 = vld [vmem:[%s494] sm:$0x1]
      %v526 = vld [vmem:[%s494 + $0x1] sm:$0x1]
      %v527 = vld [vmem:[%s494 + $0x2] sm:$0x1]
      %v528 = vld [vmem:[%s494 + $0x3] sm:$0x1]
      %v529 = vld [vmem:[%s494 + $0x4] sm:$0x1]
      %v530 = vld [vmem:[%s494 + $0x5] sm:$0x1]
      %v531 = vld [vmem:[%s494 + $0x6] sm:$0x1]
      %v532 = vld [vmem:[%s494 + $0x7] sm:$0x1]
      %v535 = vunpack.c.l.b16 %v509
      %v536 = vunpack.c.l.b16 %v510
      %v537 = vpack.c.b16 %v536, %v535
      %vm539 = vcmask 130048
      %v541 = vsel %vm539, %v525, 0
      %543 = vmatprep.subr.bf16.mxu0 0
      %544 = vmatpush1.bf16.msra.mxu0 %v537
      %545 = vmatprep.subr.bf16.mxu0 0
      %546 = vmatpush1.bf16.msra.mxu0 0
      %547 = vmatprep.subr.bf16.mxu0 0
      %548 = vmatpush1.bf16.msra.mxu0 0
      %549 = vmatprep.subr.bf16.mxu0 0
      %550 = vmatpush1.bf16.msra.mxu0 0
      %551 = vmatprep.subr.bf16.mxu0 0
      %552 = vmatpush1.bf16.msra.mxu0 0
      %553 = vmatprep.subr.bf16.mxu0 0
      %554 = vmatpush1.bf16.msra.mxu0 0
      %555 = vmatprep.subr.bf16.mxu0 0
      %556 = vmatpush1.bf16.msra.mxu0 0
      %557 = vmatprep.subr.bf16.mxu0 0
      %558 = vmatpush1.bf16.msra.mxu0 0
      %559 = vmatprep.subr.bf16.mxu0 0
      %560 = vmatpush1.bf16.msra.mxu0 0
      %561 = vmatprep.subr.bf16.mxu0 0
      %562 = vmatpush1.bf16.msra.mxu0 0
      %563 = vmatprep.subr.bf16.mxu0 0
      %564 = vmatpush1.bf16.msra.mxu0 0
      %565 = vmatprep.subr.bf16.mxu0 0
      %566 = vmatpush1.bf16.msra.mxu0 0
      %567 = vmatprep.subr.bf16.mxu0 0
      %568 = vmatpush1.bf16.msra.mxu0 0
      %569 = vmatprep.subr.bf16.mxu0 0
      %570 = vmatpush1.bf16.msra.mxu0 0
      %571 = vmatprep.subr.bf16.mxu0 0
      %572 = vmatpush1.bf16.msra.mxu0 0
      %573 = vmatprep.subr.bf16.mxu0 0
      %574 = vmatpush1.bf16.msra.mxu0 0
      %575 = vmatprep.mubr.bf16.mxu0 0
      %576 = vmatmul.mubr.bf16.gmra.mrb[0].mxu0 %v541
      %v577 = vpop.f32.mrb[0].mxu0
      %v578 = vadd.f32 0.0, %v577
      %v579 = vpop.f32.mrb[0].mxu0
      %v580 = vpop.f32.mrb[0].mxu0
      %v581 = vpop.f32.mrb[0].mxu0
      %582 = vdwg.mxu0
      %v585 = vunpack.c.l.b16 %v511
      %v586 = vunpack.c.l.b16 %v512
      %v587 = vpack.c.b16 %v586, %v585
      %v590 = vsel %vm539, %v526, 0
      %592 = vmatprep.subr.bf16.mxu0 0
      %593 = vmatpush1.bf16.msra.mxu0 %v587
      %594 = vmatprep.subr.bf16.mxu0 0
      %595 = vmatpush1.bf16.msra.mxu0 0
      %596 = vmatprep.subr.bf16.mxu0 0
      %597 = vmatpush1.bf16.msra.mxu0 0
      %598 = vmatprep.subr.bf16.mxu0 0
      %599 = vmatpush1.bf16.msra.mxu0 0
      %600 = vmatprep.subr.bf16.mxu0 0
      %601 = vmatpush1.bf16.msra.mxu0 0
      %602 = vmatprep.subr.bf16.mxu0 0
      %603 = vmatpush1.bf16.msra.mxu0 0
      %604 = vmatprep.subr.bf16.mxu0 0
      %605 = vmatpush1.bf16.msra.mxu0 0
      %606 = vmatprep.subr.bf16.mxu0 0
      %607 = vmatpush1.bf16.msra.mxu0 0
      %608 = vmatprep.subr.bf16.mxu0 0
      %609 = vmatpush1.bf16.msra.mxu0 0
      %610 = vmatprep.subr.bf16.mxu0 0
      %611 = vmatpush1.bf16.msra.mxu0 0
      %612 = vmatprep.subr.bf16.mxu0 0
      %613 = vmatpush1.bf16.msra.mxu0 0
      %614 = vmatprep.subr.bf16.mxu0 0
      %615 = vmatpush1.bf16.msra.mxu0 0
      %616 = vmatprep.subr.bf16.mxu0 0
      %617 = vmatpush1.bf16.msra.mxu0 0
      %618 = vmatprep.subr.bf16.mxu0 0
      %619 = vmatpush1.bf16.msra.mxu0 0
      %620 = vmatprep.subr.bf16.mxu0 0
      %621 = vmatpush1.bf16.msra.mxu0 0
      %622 = vmatprep.subr.bf16.mxu0 0
      %623 = vmatpush1.bf16.msra.mxu0 0
      %624 = vmatprep.mubr.bf16.mxu0 0
      %625 = vmatmul.mubr.bf16.gmra.mrb[0].mxu0 %v590
      %v626 = vpop.f32.mrb[0].mxu0
      %v627 = vadd.f32 0.0, %v626
      %v628 = vpop.f32.mrb[0].mxu0
      %v629 = vpop.f32.mrb[0].mxu0
      %v630 = vpop.f32.mrb[0].mxu0
      %631 = vdwg.mxu0
      %v634 = vunpack.c.l.b16 %v513
      %v635 = vunpack.c.l.b16 %v514
      %v636 = vpack.c.b16 %v635, %v634
      %v639 = vsel %vm539, %v527, 0
      %641 = vmatprep.subr.bf16.mxu0 0
      %642 = vmatpush1.bf16.msra.mxu0 %v636
      %643 = vmatprep.subr.bf16.mxu0 0
      %644 = vmatpush1.bf16.msra.mxu0 0
      %645 = vmatprep.subr.bf16.mxu0 0
      %646 = vmatpush1.bf16.msra.mxu0 0
      %647 = vmatprep.subr.bf16.mxu0 0
      %648 = vmatpush1.bf16.msra.mxu0 0
      %649 = vmatprep.subr.bf16.mxu0 0
      %650 = vmatpush1.bf16.msra.mxu0 0
      %651 = vmatprep.subr.bf16.mxu0 0
      %652 = vmatpush1.bf16.msra.mxu0 0
      %653 = vmatprep.subr.bf16.mxu0 0
      %654 = vmatpush1.bf16.msra.mxu0 0
      %655 = vmatprep.subr.bf16.mxu0 0
      %656 = vmatpush1.bf16.msra.mxu0 0
      %657 = vmatprep.subr.bf16.mxu0 0
      %658 = vmatpush1.bf16.msra.mxu0 0
      %659 = vmatprep.subr.bf16.mxu0 0
      %660 = vmatpush1.bf16.msra.mxu0 0
      %661 = vmatprep.subr.bf16.mxu0 0
      %662 = vmatpush1.bf16.msra.mxu0 0
      %663 = vmatprep.subr.bf16.mxu0 0
      %664 = vmatpush1.bf16.msra.mxu0 0
      %665 = vmatprep.subr.bf16.mxu0 0
      %666 = vmatpush1.bf16.msra.mxu0 0
      %667 = vmatprep.subr.bf16.mxu0 0
      %668 = vmatpush1.bf16.msra.mxu0 0
      %669 = vmatprep.subr.bf16.mxu0 0
      %670 = vmatpush1.bf16.msra.mxu0 0
      %671 = vmatprep.subr.bf16.mxu0 0
      %672 = vmatpush1.bf16.msra.mxu0 0
      %673 = vmatprep.mubr.bf16.mxu0 0
      %674 = vmatmul.mubr.bf16.gmra.mrb[0].mxu0 %v639
      %v675 = vpop.f32.mrb[0].mxu0
      %v676 = vadd.f32 0.0, %v675
      %v677 = vpop.f32.mrb[0].mxu0
      %v678 = vpop.f32.mrb[0].mxu0
      %v679 = vpop.f32.mrb[0].mxu0
      %680 = vdwg.mxu0
      %v683 = vunpack.c.l.b16 %v515
      %v684 = vunpack.c.l.b16 %v516
      %v685 = vpack.c.b16 %v684, %v683
      %v688 = vsel %vm539, %v528, 0
      %690 = vmatprep.subr.bf16.mxu0 0
      %691 = vmatpush1.bf16.msra.mxu0 %v685
      %692 = vmatprep.subr.bf16.mxu0 0
      %693 = vmatpush1.bf16.msra.mxu0 0
      %694 = vmatprep.subr.bf16.mxu0 0
      %695 = vmatpush1.bf16.msra.mxu0 0
      %696 = vmatprep.subr.bf16.mxu0 0
      %697 = vmatpush1.bf16.msra.mxu0 0
      %698 = vmatprep.subr.bf16.mxu0 0
      %699 = vmatpush1.bf16.msra.mxu0 0
      %700 = vmatprep.subr.bf16.mxu0 0
      %701 = vmatpush1.bf16.msra.mxu0 0
      %702 = vmatprep.subr.bf16.mxu0 0
      %703 = vmatpush1.bf16.msra.mxu0 0
      %704 = vmatprep.subr.bf16.mxu0 0
      %705 = vmatpush1.bf16.msra.mxu0 0
      %706 = vmatprep.subr.bf16.mxu0 0
      %707 = vmatpush1.bf16.msra.mxu0 0
      %708 = vmatprep.subr.bf16.mxu0 0
      %709 = vmatpush1.bf16.msra.mxu0 0
      %710 = vmatprep.subr.bf16.mxu0 0
      %711 = vmatpush1.bf16.msra.mxu0 0
      %712 = vmatprep.subr.bf16.mxu0 0
      %713 = vmatpush1.bf16.msra.mxu0 0
      %714 = vmatprep.subr.bf16.mxu0 0
      %715 = vmatpush1.bf16.msra.mxu0 0
      %716 = vmatprep.subr.bf16.mxu0 0
      %717 = vmatpush1.bf16.msra.mxu0 0
      %718 = vmatprep.subr.bf16.mxu0 0
      %719 = vmatpush1.bf16.msra.mxu0 0
      %720 = vmatprep.subr.bf16.mxu0 0
      %721 = vmatpush1.bf16.msra.mxu0 0
      %722 = vmatprep.mubr.bf16.mxu0 0
      %723 = vmatmul.mubr.bf16.gmra.mrb[0].mxu0 %v688
      %v724 = vpop.f32.mrb[0].mxu0
      %v725 = vadd.f32 0.0, %v724
      %v726 = vpop.f32.mrb[0].mxu0
      %v727 = vpop.f32.mrb[0].mxu0
      %v728 = vpop.f32.mrb[0].mxu0
      %729 = vdwg.mxu0
      %v732 = vunpack.c.l.b16 %v517
      %v733 = vunpack.c.l.b16 %v518
      %v734 = vpack.c.b16 %v733, %v732
      %v737 = vsel %vm539, %v529, 0
      %739 = vmatprep.subr.bf16.mxu0 0
      %740 = vmatpush1.bf16.msra.mxu0 %v734
      %741 = vmatprep.subr.bf16.mxu0 0
      %742 = vmatpush1.bf16.msra.mxu0 0
      %743 = vmatprep.subr.bf16.mxu0 0
      %744 = vmatpush1.bf16.msra.mxu0 0
      %745 = vmatprep.subr.bf16.mxu0 0
      %746 = vmatpush1.bf16.msra.mxu0 0
      %747 = vmatprep.subr.bf16.mxu0 0
      %748 = vmatpush1.bf16.msra.mxu0 0
      %749 = vmatprep.subr.bf16.mxu0 0
      %750 = vmatpush1.bf16.msra.mxu0 0
      %751 = vmatprep.subr.bf16.mxu0 0
      %752 = vmatpush1.bf16.msra.mxu0 0
      %753 = vmatprep.subr.bf16.mxu0 0
      %754 = vmatpush1.bf16.msra.mxu0 0
      %755 = vmatprep.subr.bf16.mxu0 0
      %756 = vmatpush1.bf16.msra.mxu0 0
      %757 = vmatprep.subr.bf16.mxu0 0
      %758 = vmatpush1.bf16.msra.mxu0 0
      %759 = vmatprep.subr.bf16.mxu0 0
      %760 = vmatpush1.bf16.msra.mxu0 0
      %761 = vmatprep.subr.bf16.mxu0 0
      %762 = vmatpush1.bf16.msra.mxu0 0
      %763 = vmatprep.subr.bf16.mxu0 0
      %764 = vmatpush1.bf16.msra.mxu0 0
      %765 = vmatprep.subr.bf16.mxu0 0
      %766 = vmatpush1.bf16.msra.mxu0 0
      %767 = vmatprep.subr.bf16.mxu0 0
      %768 = vmatpush1.bf16.msra.mxu0 0
      %769 = vmatprep.subr.bf16.mxu0 0
      %770 = vmatpush1.bf16.msra.mxu0 0
      %771 = vmatprep.mubr.bf16.mxu0 0
      %772 = vmatmul.mubr.bf16.gmra.mrb[0].mxu0 %v737
      %v773 = vpop.f32.mrb[0].mxu0
      %v774 = vadd.f32 0.0, %v773
      %v775 = vpop.f32.mrb[0].mxu0
      %v776 = vpop.f32.mrb[0].mxu0
      %v777 = vpop.f32.mrb[0].mxu0
      %778 = vdwg.mxu0
      %v781 = vunpack.c.l.b16 %v519
      %v782 = vunpack.c.l.b16 %v520
      %v783 = vpack.c.b16 %v782, %v781
      %v786 = vsel %vm539, %v530, 0
      %788 = vmatprep.subr.bf16.mxu0 0
      %789 = vmatpush1.bf16.msra.mxu0 %v783
      %790 = vmatprep.subr.bf16.mxu0 0
      %791 = vmatpush1.bf16.msra.mxu0 0
      %792 = vmatprep.subr.bf16.mxu0 0
      %793 = vmatpush1.bf16.msra.mxu0 0
      %794 = vmatprep.subr.bf16.mxu0 0
      %795 = vmatpush1.bf16.msra.mxu0 0
      %796 = vmatprep.subr.bf16.mxu0 0
      %797 = vmatpush1.bf16.msra.mxu0 0
      %798 = vmatprep.subr.bf16.mxu0 0
      %799 = vmatpush1.bf16.msra.mxu0 0
      %800 = vmatprep.subr.bf16.mxu0 0
      %801 = vmatpush1.bf16.msra.mxu0 0
      %802 = vmatprep.subr.bf16.mxu0 0
      %803 = vmatpush1.bf16.msra.mxu0 0
      %804 = vmatprep.subr.bf16.mxu0 0
      %805 = vmatpush1.bf16.msra.mxu0 0
      %806 = vmatprep.subr.bf16.mxu0 0
      %807 = vmatpush1.bf16.msra.mxu0 0
      %808 = vmatprep.subr.bf16.mxu0 0
      %809 = vmatpush1.bf16.msra.mxu0 0
      %810 = vmatprep.subr.bf16.mxu0 0
      %811 = vmatpush1.bf16.msra.mxu0 0
      %812 = vmatprep.subr.bf16.mxu0 0
      %813 = vmatpush1.bf16.msra.mxu0 0
      %814 = vmatprep.subr.bf16.mxu0 0
      %815 = vmatpush1.bf16.msra.mxu0 0
      %816 = vmatprep.subr.bf16.mxu0 0
      %817 = vmatpush1.bf16.msra.mxu0 0
      %818 = vmatprep.subr.bf16.mxu0 0
      %819 = vmatpush1.bf16.msra.mxu0 0
      %820 = vmatprep.mubr.bf16.mxu0 0
      %821 = vmatmul.mubr.bf16.gmra.mrb[0].mxu0 %v786
      %v822 = vpop.f32.mrb[0].mxu0
      %v823 = vadd.f32 0.0, %v822
      %v824 = vpop.f32.mrb[0].mxu0
      %v825 = vpop.f32.mrb[0].mxu0
      %v826 = vpop.f32.mrb[0].mxu0
      %827 = vdwg.mxu0
      %v830 = vunpack.c.l.b16 %v521
      %v831 = vunpack.c.l.b16 %v522
      %v832 = vpack.c.b16 %v831, %v830
      %v835 = vsel %vm539, %v531, 0
      %837 = vmatprep.subr.bf16.mxu0 0
      %838 = vmatpush1.bf16.msra.mxu0 %v832
      %839 = vmatprep.subr.bf16.mxu0 0
      %840 = vmatpush1.bf16.msra.mxu0 0
      %841 = vmatprep.subr.bf16.mxu0 0
      %842 = vmatpush1.bf16.msra.mxu0 0
      %843 = vmatprep.subr.bf16.mxu0 0
      %844 = vmatpush1.bf16.msra.mxu0 0
      %845 = vmatprep.subr.bf16.mxu0 0
      %846 = vmatpush1.bf16.msra.mxu0 0
      %847 = vmatprep.subr.bf16.mxu0 0
      %848 = vmatpush1.bf16.msra.mxu0 0
      %849 = vmatprep.subr.bf16.mxu0 0
      %850 = vmatpush1.bf16.msra.mxu0 0
      %851 = vmatprep.subr.bf16.mxu0 0
      %852 = vmatpush1.bf16.msra.mxu0 0
      %853 = vmatprep.subr.bf16.mxu0 0
      %854 = vmatpush1.bf16.msra.mxu0 0
      %855 = vmatprep.subr.bf16.mxu0 0
      %856 = vmatpush1.bf16.msra.mxu0 0
      %857 = vmatprep.subr.bf16.mxu0 0
      %858 = vmatpush1.bf16.msra.mxu0 0
      %859 = vmatprep.subr.bf16.mxu0 0
      %860 = vmatpush1.bf16.msra.mxu0 0
      %861 = vmatprep.subr.bf16.mxu0 0
      %862 = vmatpush1.bf16.msra.mxu0 0
      %863 = vmatprep.subr.bf16.mxu0 0
      %864 = vmatpush1.bf16.msra.mxu0 0
      %865 = vmatprep.subr.bf16.mxu0 0
      %866 = vmatpush1.bf16.msra.mxu0 0
      %867 = vmatprep.subr.bf16.mxu0 0
      %868 = vmatpush1.bf16.msra.mxu0 0
      %869 = vmatprep.mubr.bf16.mxu0 0
      %870 = vmatmul.mubr.bf16.gmra.mrb[0].mxu0 %v835
      %v871 = vpop.f32.mrb[0].mxu0
      %v872 = vadd.f32 0.0, %v871
      %v873 = vpop.f32.mrb[0].mxu0
      %v874 = vpop.f32.mrb[0].mxu0
      %v875 = vpop.f32.mrb[0].mxu0
      %876 = vdwg.mxu0
      %v879 = vunpack.c.l.b16 %v523
      %v880 = vunpack.c.l.b16 %v524
      %v881 = vpack.c.b16 %v880, %v879
      %v884 = vsel %vm539, %v532, 0
      %886 = vmatprep.subr.bf16.mxu0 0
      %887 = vmatpush1.bf16.msra.mxu0 %v881
      %888 = vmatprep.subr.bf16.mxu0 0
      %889 = vmatpush1.bf16.msra.mxu0 0
      %890 = vmatprep.subr.bf16.mxu0 0
      %891 = vmatpush1.bf16.msra.mxu0 0
      %892 = vmatprep.subr.bf16.mxu0 0
      %893 = vmatpush1.bf16.msra.mxu0 0
      %894 = vmatprep.subr.bf16.mxu0 0
      %895 = vmatpush1.bf16.msra.mxu0 0
      %896 = vmatprep.subr.bf16.mxu0 0
      %897 = vmatpush1.bf16.msra.mxu0 0
      %898 = vmatprep.subr.bf16.mxu0 0
      %899 = vmatpush1.bf16.msra.mxu0 0
      %900 = vmatprep.subr.bf16.mxu0 0
      %901 = vmatpush1.bf16.msra.mxu0 0
      %902 = vmatprep.subr.bf16.mxu0 0
      %903 = vmatpush1.bf16.msra.mxu0 0
      %904 = vmatprep.subr.bf16.mxu0 0
      %905 = vmatpush1.bf16.msra.mxu0 0
      %906 = vmatprep.subr.bf16.mxu0 0
      %907 = vmatpush1.bf16.msra.mxu0 0
      %908 = vmatprep.subr.bf16.mxu0 0
      %909 = vmatpush1.bf16.msra.mxu0 0
      %910 = vmatprep.subr.bf16.mxu0 0
      %911 = vmatpush1.bf16.msra.mxu0 0
      %912 = vmatprep.subr.bf16.mxu0 0
      %913 = vmatpush1.bf16.msra.mxu0 0
      %914 = vmatprep.subr.bf16.mxu0 0
      %915 = vmatpush1.bf16.msra.mxu0 0
      %916 = vmatprep.subr.bf16.mxu0 0
      %917 = vmatpush1.bf16.msra.mxu0 0
      %918 = vmatprep.mubr.bf16.mxu0 0
      %919 = vmatmul.mubr.bf16.gmra.mrb[0].mxu0 %v884
      %v920 = vpop.f32.mrb[0].mxu0
      %v921 = vadd.f32 0.0, %v920
      %v922 = vpop.f32.mrb[0].mxu0
      %v923 = vpop.f32.mrb[0].mxu0
      %v924 = vpop.f32.mrb[0].mxu0
      %925 = vdwg.mxu0
      %v926 = vld [vmem:[%s499] sm:$0xff]
      %928 = vset.pattern.permute.xlu0 0
      %929 = vperm.xlu0 %928, %v926
      %v930 = vpop.permute.xlu0 %929
      %v931 = vrot.slane %v930, 1
      %v932 = vrot.slane %v930, 2
      %v933 = vrot.slane %v930, 3
      %v934 = vrot.slane %v930, 4
      %v935 = vrot.slane %v930, 5
      %v936 = vrot.slane %v930, 6
      %v937 = vrot.slane %v930, 7
      %v946 = vmul.f32 %v578, %v930
      %v947 = vmul.f32 %v627, %v931
      %v948 = vmul.f32 %v676, %v932
      %v949 = vmul.f32 %v725, %v933
      %v950 = vmul.f32 %v774, %v934
      %v951 = vmul.f32 %v823, %v935
      %v952 = vmul.f32 %v872, %v936
      %v953 = vmul.f32 %v921, %v937
      %954 = vset.pattern.permute.xlu0 1
      %955 = vperm.xlu0 %954, %v926
      %v956 = vpop.permute.xlu0 %955
      %v957 = vrot.slane %v956, 7
      %v958 = vrot.slane %v956, 1
      %v959 = vrot.slane %v956, 2
      %v960 = vrot.slane %v956, 3
      %v961 = vrot.slane %v956, 4
      %v962 = vrot.slane %v956, 5
      %v963 = vrot.slane %v956, 6
      %v972 = vmul.f32 %v578, %v957
      %v973 = vmul.f32 %v627, %v956
      %v974 = vmul.f32 %v676, %v958
      %v975 = vmul.f32 %v725, %v959
      %v976 = vmul.f32 %v774, %v960
      %v977 = vmul.f32 %v823, %v961
      %v978 = vmul.f32 %v872, %v962
      %v979 = vmul.f32 %v921, %v963
      %v980 = vld [vmem:[%s490] sm:$0xf]
      %v981 = vld [vmem:[%s4] sm:$0xf]
      %v982 = vld [vmem:[%s4 + $0x4] sm:$0xf]
      %v983 = vld [vmem:[%s4 + $0x8] sm:$0xf]
      %v984 = vld [vmem:[%s4 + $0xc] sm:$0xf]
      %v985 = vld [vmem:[%s5] sm:$0x1]
      %v986 = vunpack.c.l.bf16 %v985
      %v987 = vlaneseq
      %v988 = vshrl.u32 %v987, 7
      %v989 = vsub.s32 0, %v988
      %v990 = vrot.slane %v986, %v989
      %v995 = vunpack.c.l.b16 %v981
      %v996 = vunpack.c.l.b16 %v982
      %v997 = vunpack.c.l.b16 %v983
      %v998 = vunpack.c.l.b16 %v984
      %v999 = vpack.c.b16 %v996, %v995
      %v1000 = vpack.c.b16 %v998, %v997
      %vm1003 = vcmask 261120
      %v1005 = vsel %vm1003, %v980, 0
      %1007 = vmatprep.subr.bf16.mxu0 0
      %1008 = vmatpush1.bf16.msra.mxu0 %v999
      %1009 = vmatprep.subr.bf16.mxu0 0
      %1010 = vmatpush1.bf16.msra.mxu0 %v1000
      %1011 = vmatprep.subr.bf16.mxu0 0
      %1012 = vmatpush1.bf16.msra.mxu0 0
      %1013 = vmatprep.subr.bf16.mxu0 0
      %1014 = vmatpush1.bf16.msra.mxu0 0
      %1015 = vmatprep.subr.bf16.mxu0 0
      %1016 = vmatpush1.bf16.msra.mxu0 0
      %1017 = vmatprep.subr.bf16.mxu0 0
      %1018 = vmatpush1.bf16.msra.mxu0 0
      %1019 = vmatprep.subr.bf16.mxu0 0
      %1020 = vmatpush1.bf16.msra.mxu0 0
      %1021 = vmatprep.subr.bf16.mxu0 0
      %1022 = vmatpush1.bf16.msra.mxu0 0
      %1023 = vmatprep.subr.bf16.mxu0 0
      %1024 = vmatpush1.bf16.msra.mxu0 0
      %1025 = vmatprep.subr.bf16.mxu0 0
      %1026 = vmatpush1.bf16.msra.mxu0 0
      %1027 = vmatprep.subr.bf16.mxu0 0
      %1028 = vmatpush1.bf16.msra.mxu0 0
      %1029 = vmatprep.subr.bf16.mxu0 0
      %1030 = vmatpush1.bf16.msra.mxu0 0
      %1031 = vmatprep.subr.bf16.mxu0 0
      %1032 = vmatpush1.bf16.msra.mxu0 0
      %1033 = vmatprep.subr.bf16.mxu0 0
      %1034 = vmatpush1.bf16.msra.mxu0 0
      %1035 = vmatprep.subr.bf16.mxu0 0
      %1036 = vmatpush1.bf16.msra.mxu0 0
      %1037 = vmatprep.subr.bf16.mxu0 0
      %1038 = vmatpush1.bf16.msra.mxu0 0
      %1039 = vmatprep.mubr.bf16.mxu0 0
      %1040 = vmatmul.mubr.bf16.gmra.mrb[0].mxu0 %v1005
      %v1041 = vpop.f32.mrb[0].mxu0
      %v1042 = vadd.f32 %v990, %v1041
      %v1043 = vpop.f32.mrb[0].mxu0
      %v1044 = vpop.f32.mrb[0].mxu0
      %v1045 = vpop.f32.mrb[0].mxu0
      %1046 = vdwg.mxu0
      %v1047 = vtanh.pop %v1042
      %v1048 = vpack.c.bf16 %v946, %v946
      %v1049 = vpack.c.bf16 %v947, %v947
      %v1050 = vpack.c.bf16 %v948, %v948
      %v1051 = vpack.c.bf16 %v949, %v949
      %v1052 = vpack.c.bf16 %v950, %v950
      %v1053 = vpack.c.bf16 %v951, %v951
      %v1054 = vpack.c.bf16 %v952, %v952
      %v1055 = vpack.c.bf16 %v953, %v953
      %v1056 = vld [vmem:[%s6] sm:$0xf]
      %v1057 = vld [vmem:[%s6 + $0x4] sm:$0xf]
      %v1058 = vld [vmem:[%s6 + $0x8] sm:$0xf]
      %v1059 = vld [vmem:[%s6 + $0xc] sm:$0xf]
      %v1060 = vld [vmem:[%s7] sm:$0x1]
      %v1061 = vunpack.c.l.bf16 %v1060
      %v1062 = vlaneseq
      %v1063 = vshrl.u32 %v1062, 7
      %v1064 = vsub.s32 0, %v1063
      %v1065 = vrot.slane %v1061, %v1064
      %v1074 = vunpack.c.l.b16 %v1048
      %v1075 = vunpack.c.l.b16 %v1049
      %v1076 = vunpack.c.l.b16 %v1050
      %v1077 = vunpack.c.l.b16 %v1051
      %v1078 = vunpack.c.l.b16 %v1052
      %v1079 = vunpack.c.l.b16 %v1053
      %v1080 = vunpack.c.l.b16 %v1054
      %v1081 = vunpack.c.l.b16 %v1055
      %v1082 = vrot.slane %v1075, 7
      %vm1083 = vcmask 1041409
      %v1084 = vsel %vm1083, %v1082, %v1074
      %v1085 = vrot.slane %v1076, 6
      %vm1086 = vcmask 1042434
      %v1087 = vsel %vm1086, %v1085, %v1084
      %v1088 = vrot.slane %v1077, 5
      %vm1089 = vcmask 1043459
      %v1090 = vsel %vm1089, %v1088, %v1087
      %v1091 = vrot.slane %v1078, 4
      %vm1092 = vcmask 1044484
      %v1093 = vsel %vm1092, %v1091, %v1090
      %v1094 = vrot.slane %v1079, 3
      %vm1095 = vcmask 1045509
      %v1096 = vsel %vm1095, %v1094, %v1093
      %v1097 = vrot.slane %v1080, 2
      %vm1098 = vcmask 1046534
      %v1099 = vsel %vm1098, %v1097, %v1096
      %v1100 = vrot.slane %v1081, 1
      %vm1101 = vcmask 1047559
      %v1102 = vsel %vm1101, %v1100, %v1099
      %v1103 = vpack.c.b16 %v1102, %v1102
      %v1108 = vunpack.c.l.b16 %v1056
      %v1109 = vunpack.c.l.b16 %v1057
      %v1110 = vunpack.c.l.b16 %v1058
      %v1111 = vunpack.c.l.b16 %v1059
      %v1112 = vpack.c.b16 %v1109, %v1108
      %v1113 = vpack.c.b16 %v1111, %v1110
      %v1117 = vsel %vm1003, %v1103, 0
      %1119 = vmatprep.subr.bf16.mxu0 0
      %1120 = vmatpush1.bf16.msra.mxu0 %v1112
      %1121 = vmatprep.subr.bf16.mxu0 0
      %1122 = vmatpush1.bf16.msra.mxu0 %v1113
      %1123 = vmatprep.subr.bf16.mxu0 0
      %1124 = vmatpush1.bf16.msra.mxu0 0
      %1125 = vmatprep.subr.bf16.mxu0 0
      %1126 = vmatpush1.bf16.msra.mxu0 0
      %1127 = vmatprep.subr.bf16.mxu0 0
      %1128 = vmatpush1.bf16.msra.mxu0 0
      %1129 = vmatprep.subr.bf16.mxu0 0
      %1130 = vmatpush1.bf16.msra.mxu0 0
      %1131 = vmatprep.subr.bf16.mxu0 0
      %1132 = vmatpush1.bf16.msra.mxu0 0
      %1133 = vmatprep.subr.bf16.mxu0 0
      %1134 = vmatpush1.bf16.msra.mxu0 0
      %1135 = vmatprep.subr.bf16.mxu0 0
      %1136 = vmatpush1.bf16.msra.mxu0 0
      %1137 = vmatprep.subr.bf16.mxu0 0
      %1138 = vmatpush1.bf16.msra.mxu0 0
      %1139 = vmatprep.subr.bf16.mxu0 0
      %1140 = vmatpush1.bf16.msra.mxu0 0
      %1141 = vmatprep.subr.bf16.mxu0 0
      %1142 = vmatpush1.bf16.msra.mxu0 0
      %1143 = vmatprep.subr.bf16.mxu0 0
      %1144 = vmatpush1.bf16.msra.mxu0 0
      %1145 = vmatprep.subr.bf16.mxu0 0
      %1146 = vmatpush1.bf16.msra.mxu0 0
      %1147 = vmatprep.subr.bf16.mxu0 0
      %1148 = vmatpush1.bf16.msra.mxu0 0
      %1149 = vmatprep.subr.bf16.mxu0 0
      %1150 = vmatpush1.bf16.msra.mxu0 0
      %1151 = vmatprep.mubr.bf16.mxu0 0
      %1152 = vmatmul.mubr.bf16.gmra.mrb[0].mxu0 %v1117
      %v1153 = vpop.f32.mrb[0].mxu0
      %v1154 = vadd.f32 %v1065, %v1153
      %v1155 = vpop.f32.mrb[0].mxu0
      %v1156 = vpop.f32.mrb[0].mxu0
      %v1157 = vpop.f32.mrb[0].mxu0
      %1158 = vdwg.mxu0
      %v1159 = vtanh.pop %v1154
      %v1160 = vpack.c.bf16 %v972, %v972
      %v1161 = vpack.c.bf16 %v973, %v973
      %v1162 = vpack.c.bf16 %v974, %v974
      %v1163 = vpack.c.bf16 %v975, %v975
      %v1164 = vpack.c.bf16 %v976, %v976
      %v1165 = vpack.c.bf16 %v977, %v977
      %v1166 = vpack.c.bf16 %v978, %v978
      %v1167 = vpack.c.bf16 %v979, %v979
      %v1168 = vld [vmem:[%s8] sm:$0xf]
      %v1169 = vld [vmem:[%s8 + $0x4] sm:$0xf]
      %v1170 = vld [vmem:[%s8 + $0x8] sm:$0xf]
      %v1171 = vld [vmem:[%s8 + $0xc] sm:$0xf]
      %v1172 = vld [vmem:[%s9] sm:$0x1]
      %v1173 = vunpack.c.l.bf16 %v1172
      %v1174 = vlaneseq
      %v1175 = vshrl.u32 %v1174, 7
      %v1176 = vsub.s32 0, %v1175
      %v1177 = vrot.slane %v1173, %v1176
      %v1186 = vunpack.c.l.b16 %v1160
      %v1187 = vunpack.c.l.b16 %v1161
      %v1188 = vunpack.c.l.b16 %v1162
      %v1189 = vunpack.c.l.b16 %v1163
      %v1190 = vunpack.c.l.b16 %v1164
      %v1191 = vunpack.c.l.b16 %v1165
      %v1192 = vunpack.c.l.b16 %v1166
      %v1193 = vunpack.c.l.b16 %v1167
      %v1194 = vrot.slane %v1186, 1
      %v1195 = vsel %vm1083, %v1187, %v1194
      %v1196 = vrot.slane %v1188, 7
      %v1197 = vsel %vm1086, %v1196, %v1195
      %v1198 = vrot.slane %v1189, 6
      %v1199 = vsel %vm1089, %v1198, %v1197
      %v1200 = vrot.slane %v1190, 5
      %v1201 = vsel %vm1092, %v1200, %v1199
      %v1202 = vrot.slane %v1191, 4
      %v1203 = vsel %vm1095, %v1202, %v1201
      %v1204 = vrot.slane %v1192, 3
      %v1205 = vsel %vm1098, %v1204, %v1203
      %v1206 = vrot.slane %v1193, 2
      %v1207 = vsel %vm1101, %v1206, %v1205
      %v1208 = vpack.c.b16 %v1207, %v1207
      %v1213 = vunpack.c.l.b16 %v1168
      %v1214 = vunpack.c.l.b16 %v1169
      %v1215 = vunpack.c.l.b16 %v1170
      %v1216 = vunpack.c.l.b16 %v1171
      %v1217 = vpack.c.b16 %v1214, %v1213
      %v1218 = vpack.c.b16 %v1216, %v1215
      %v1222 = vsel %vm1003, %v1208, 0
      %1224 = vmatprep.subr.bf16.mxu0 0
      %1225 = vmatpush1.bf16.msra.mxu0 %v1217
      %1226 = vmatprep.subr.bf16.mxu0 0
      %1227 = vmatpush1.bf16.msra.mxu0 %v1218
      %1228 = vmatprep.subr.bf16.mxu0 0
      %1229 = vmatpush1.bf16.msra.mxu0 0
      %1230 = vmatprep.subr.bf16.mxu0 0
      %1231 = vmatpush1.bf16.msra.mxu0 0
      %1232 = vmatprep.subr.bf16.mxu0 0
      %1233 = vmatpush1.bf16.msra.mxu0 0
      %1234 = vmatprep.subr.bf16.mxu0 0
      %1235 = vmatpush1.bf16.msra.mxu0 0
      %1236 = vmatprep.subr.bf16.mxu0 0
      %1237 = vmatpush1.bf16.msra.mxu0 0
      %1238 = vmatprep.subr.bf16.mxu0 0
      %1239 = vmatpush1.bf16.msra.mxu0 0
      %1240 = vmatprep.subr.bf16.mxu0 0
      %1241 = vmatpush1.bf16.msra.mxu0 0
      %1242 = vmatprep.subr.bf16.mxu0 0
      %1243 = vmatpush1.bf16.msra.mxu0 0
      %1244 = vmatprep.subr.bf16.mxu0 0
      %1245 = vmatpush1.bf16.msra.mxu0 0
      %1246 = vmatprep.subr.bf16.mxu0 0
      %1247 = vmatpush1.bf16.msra.mxu0 0
      %1248 = vmatprep.subr.bf16.mxu0 0
      %1249 = vmatpush1.bf16.msra.mxu0 0
      %1250 = vmatprep.subr.bf16.mxu0 0
      %1251 = vmatpush1.bf16.msra.mxu0 0
      %1252 = vmatprep.subr.bf16.mxu0 0
      %1253 = vmatpush1.bf16.msra.mxu0 0
      %1254 = vmatprep.subr.bf16.mxu0 0
      %1255 = vmatpush1.bf16.msra.mxu0 0
      %1256 = vmatprep.mubr.bf16.mxu0 0
      %1257 = vmatmul.mubr.bf16.gmra.mrb[0].mxu0 %v1222
      %v1258 = vpop.f32.mrb[0].mxu0
      %v1259 = vadd.f32 %v1177, %v1258
      %v1260 = vpop.f32.mrb[0].mxu0
      %v1261 = vpop.f32.mrb[0].mxu0
      %v1262 = vpop.f32.mrb[0].mxu0
      %1263 = vdwg.mxu0
      %v1264 = vtanh.pop %v1259
      %1266 = vrot.lane.b32.xlu0 %v1159, 32
      %v1267 = vpop.permute.xlu0 %1266
      %1270 = vrot.lane.b32.xlu0 %v1264, 64
      %v1271 = vpop.permute.xlu0 %1270
      %v1273 = vsel %vm1003, %v1047, %v1267
      %vm1274 = vcmask 523264
      %v1275 = vsel %vm1274, %v1273, %v1271
      %v1276 = vpack.c.bf16 %v1275, %v1275
      %v1277 = vld [vmem:[%s10] sm:$0xf]
      %v1278 = vld [vmem:[%s10 + $0x4] sm:$0xf]
      %v1279 = vld [vmem:[%s10 + $0x8] sm:$0xf]
      %v1280 = vld [vmem:[%s10 + $0xc] sm:$0xf]
      %v1281 = vld [vmem:[%s10 + $0x10] sm:$0xf]
      %v1282 = vld [vmem:[%s10 + $0x14] sm:$0xf]
      %v1283 = vld [vmem:[%s10 + $0x18] sm:$0xf]
      %v1284 = vld [vmem:[%s10 + $0x1c] sm:$0xf]
      %v1285 = vld [vmem:[%s10 + $0x20] sm:$0xf]
      %v1286 = vld [vmem:[%s10 + $0x24] sm:$0xf]
      %v1287 = vld [vmem:[%s10 + $0x28] sm:$0xf]
      %v1288 = vld [vmem:[%s10 + $0x2c] sm:$0xf]
      %v1289 = vld [vmem:[%s11] sm:$0x1]
      %v1290 = vunpack.c.l.bf16 %v1289
      %v1291 = vlaneseq
      %v1292 = vshrl.u32 %v1291, 7
      %v1293 = vsub.s32 0, %v1292
      %v1294 = vrot.slane %v1290, %v1293
      %v1307 = vunpack.c.l.b16 %v1277
      %v1308 = vunpack.c.l.b16 %v1278
      %v1309 = vunpack.c.l.b16 %v1279
      %v1310 = vunpack.c.l.b16 %v1280
      %v1311 = vunpack.c.l.b16 %v1281
      %v1312 = vunpack.c.l.b16 %v1282
      %v1313 = vunpack.c.l.b16 %v1283
      %v1314 = vunpack.c.l.b16 %v1284
      %v1315 = vunpack.c.l.b16 %v1285
      %v1316 = vunpack.c.l.b16 %v1286
      %v1317 = vunpack.c.l.b16 %v1287
      %v1318 = vunpack.c.l.b16 %v1288
      %v1319 = vpack.c.b16 %v1308, %v1307
      %v1320 = vpack.c.b16 %v1310, %v1309
      %v1321 = vpack.c.b16 %v1312, %v1311
      %v1322 = vpack.c.b16 %v1314, %v1313
      %v1323 = vpack.c.b16 %v1316, %v1315
      %v1324 = vpack.c.b16 %v1318, %v1317
      %vm1331 = vcmask 785408
      %v1333 = vsel %vm1331, %v1276, 0
      %1335 = vmatprep.subr.bf16.mxu0 0
      %1336 = vmatpush1.bf16.msra.mxu0 %v1319
      %1337 = vmatprep.subr.bf16.mxu0 0
      %1338 = vmatpush1.bf16.msra.mxu0 %v1320
      %1339 = vmatprep.subr.bf16.mxu0 0
      %1340 = vmatpush1.bf16.msra.mxu0 %v1321
      %1341 = vmatprep.subr.bf16.mxu0 0
      %1342 = vmatpush1.bf16.msra.mxu0 %v1322
      %1343 = vmatprep.subr.bf16.mxu0 0
      %1344 = vmatpush1.bf16.msra.mxu0 %v1323
      %1345 = vmatprep.subr.bf16.mxu0 0
      %1346 = vmatpush1.bf16.msra.mxu0 %v1324
      %1347 = vmatprep.subr.bf16.mxu0 0
      %1348 = vmatpush1.bf16.msra.mxu0 0
      %1349 = vmatprep.subr.bf16.mxu0 0
      %1350 = vmatpush1.bf16.msra.mxu0 0
      %1351 = vmatprep.subr.bf16.mxu0 0
      %1352 = vmatpush1.bf16.msra.mxu0 0
      %1353 = vmatprep.subr.bf16.mxu0 0
      %1354 = vmatpush1.bf16.msra.mxu0 0
      %1355 = vmatprep.subr.bf16.mxu0 0
      %1356 = vmatpush1.bf16.msra.mxu0 0
      %1357 = vmatprep.subr.bf16.mxu0 0
      %1358 = vmatpush1.bf16.msra.mxu0 0
      %1359 = vmatprep.subr.bf16.mxu0 0
      %1360 = vmatpush1.bf16.msra.mxu0 0
      %1361 = vmatprep.subr.bf16.mxu0 0
      %1362 = vmatpush1.bf16.msra.mxu0 0
      %1363 = vmatprep.subr.bf16.mxu0 0
      %1364 = vmatpush1.bf16.msra.mxu0 0
      %1365 = vmatprep.subr.bf16.mxu0 0
      %1366 = vmatpush1.bf16.msra.mxu0 0
      %1367 = vmatprep.mubr.bf16.mxu0 0
      %1368 = vmatmul.mubr.bf16.gmra.mrb[0].mxu0 %v1333
      %v1369 = vpop.f32.mrb[0].mxu0
      %v1370 = vadd.f32 %v1294, %v1369
      %v1371 = vpop.f32.mrb[0].mxu0
      %v1372 = vpop.f32.mrb[0].mxu0
      %v1373 = vpop.f32.mrb[0].mxu0
      %1374 = vdwg.mxu0
      %1375 = vst.msk [vmem:[%s507] sm:$0xff] %vm1331, %v1275
      %1376 = vst [vmem:[%s503] sm:$0xff] %v1370
      %p1377 = scmp.lt.s32.totalorder %s25, 1
      %s1378 = scalar_select %p1377, %s25, 1
      %s1379 = smul.addr %s1378, 8
      %s1380 = scalar_lea.vmem %s12, %s1379
      %p1381 = scmp.lt.s32.totalorder %s25, 1
      %s1382 = scalar_select %p1381, %s25, 1
      %s1383 = smul.addr %s1382, 8
      %s1384 = scalar_lea.vmem %s13, %s1383
      // Predicated region
      $region69: #{rebert_adapter_head.1} parent=67 // pred_check
        %p1385 = pneg %p315
      $region70: #{rebert_adapter_head.1} parent=67 // pred_check_branch
        %1387 = sbr.rel (%p1385) target = $region72
      $region71: #{rebert_adapter_head.1} parent=67 // pred_region
        _
      $region72: #{rebert_adapter_head.1} parent=67 // pred_fallthru
        _
      // Predicated region
      $region73: #{rebert_adapter_head.1} parent=67 // pred_check
        %p1388 = pneg %p341
      $region74: #{rebert_adapter_head.1} parent=67 // pred_check_branch
        %1390 = sbr.rel (%p1388) target = $region76
      $region75: #{rebert_adapter_head.1} parent=67 // pred_region
        _
      $region76: #{rebert_adapter_head.1} parent=67 // pred_fallthru
        _
    $region68: #{rebert_adapter_head.1} parent=5 // pred_fallthru
      _
    %p1391 = scmp.le.s32.totalorder 2, %s20
    // Predicated region
    $region77: #{rebert_adapter_head.1} parent=5 // pred_check
      %p1392 = pneg %p1391
    $region78: #{rebert_adapter_head.1} parent=5 // pred_check_branch
      %1394 = sbr.rel (%p1392) target = $region80
    $region79: #{rebert_adapter_head.1} parent=5 // pred_region
      %s1395 = ssub.s32 %s20, 2
      // Predicated region
      $region81: #{rebert_adapter_head.1} parent=79 // pred_check
        %p1396 = pneg %p321
      $region82: #{rebert_adapter_head.1} parent=79 // pred_check_branch
        %1398 = sbr.rel (%p1396) target = $region84
      $region83: #{rebert_adapter_head.1} parent=79 // pred_region
        %p1399 = scmp.lt.s32.totalorder %s26, 1
        %s1400 = scalar_select %p1399, %s26, 1
        %s1401 = smul.addr %s1400, 8
        %s1402 = scalar_lea.vmem %s12, %s1401
      $region84: #{rebert_adapter_head.1} parent=79 // pred_fallthru
        _
      // Predicated region
      $region85: #{rebert_adapter_head.1} parent=79 // pred_check
        %p1403 = pneg %p347
      $region86: #{rebert_adapter_head.1} parent=79 // pred_check_branch
        %1405 = sbr.rel (%p1403) target = $region88
      $region87: #{rebert_adapter_head.1} parent=79 // pred_region
        %p1406 = scmp.lt.s32.totalorder %s26, 1
        %s1407 = scalar_select %p1406, %s26, 1
        %s1408 = smul.addr %s1407, 8
        %s1409 = scalar_lea.vmem %s13, %s1408
      $region88: #{rebert_adapter_head.1} parent=79 // pred_fallthru
        _
    $region80: #{rebert_adapter_head.1} parent=5 // pred_fallthru
      _
  $region6: #{rebert_adapter_head.1} parent=0 // loop_footer
    %s24 = sadd.s32 1, %s20
  $region7: #{rebert_adapter_head.1} parent=0 // loop_footer_branch
    %19 = sbr.rel target = $region3
  $region8: #{rebert_adapter_head.1} parent=0 // loop_exit
    _

</llo_original>
